<compile_context>
chip_gen: v7x
topology: tpu7x:2x2x1
jax: 0.10.0
libtpu: 0.0.40
codegen_flags: <defaults>
</compile_context>

<pallas_src>
import math
from functools import partial

import jax
import jax.numpy as jnp
from jax.experimental import pallas as pl
from jax.experimental.pallas import tpu as pltpu

# ----------------------------- problem sizes -----------------------------
STATE_DIM = 16
ACTION_DIM = 4
LATENT_DIM = 8
HIDDEN = 256
MB = 8                   # rows per minibatch / grid step (BN batch)
N_MB = 4                 # number of minibatches in the demo
MAX_ACTION = 1.0
BN_WEIGHT = 0.5          # batch_normalization_weight (tau) -> BN bias fill
BN_EPS = 1e-5            # nn.BatchNorm1d default eps

# --------------------- packed input-slab lane layout ----------------------
IN_LANES = 128
OFF_STATE = 0
OFF_ACTION = STATE_DIM                    # 16
OFF_NOISE = STATE_DIM + ACTION_DIM        # 20

# ---------------------- bias-slab layout (lane offsets) -------------------
OFF_BE1 = 0
OFF_BE2 = 256
OFF_BE3 = 512
OFF_BD1 = 768
OFF_BD2 = 1024
OFF_BD3 = 1280
OFF_BHEADS = 1536        # [bm (8) | bls (8)]
OFF_BNW = 1664           # BN weight (8)
OFF_BNB = 1792           # BN bias   (8)
OFF_BD4 = 1920           # decoder output bias (4)
BIAS_SLAB = 2048

# --------------------- packed output lane layout (128-aligned) ------------
OUT_WIDTH = 384
OFF_OUT_U = 0
OFF_OUT_MEAN = 128
OFF_OUT_STD = 256


# ------------------------------ the kernel -------------------------------
def bnvae_kernel(
    in_ref,                                   # (MB, 128) f32 [state|action|noise|0]
    we1_ref, w_hidden_ref, w_heads_ref,       # (128,256) bf16, (4,256,256) bf16, (256,16) f32
    wd1s_ref, wd1z_ref, wd4_ref,              # (128,256) bf16, (8,256) bf16, (256,4) bf16
    bias_ref,                                 # (1, 2048) f32
    out_ref,                                  # (MB, 384) f32
):
    f32 = jnp.float32
    bf16 = jnp.bfloat16

    def bias(off, n):
        # Static, 128-aligned lane slice of the (1, BIAS_SLAB) f32 slab.
        return bias_ref[:, off:off + n]

    def mmb(x, w):
        # bf16 x bf16 on the MXU, f32 accumulation.
        return jnp.dot(x.astype(bf16), w, preferred_element_type=f32)

    x_in = in_ref[...]                                        # (MB, 128) f32
    noise = x_in[:, OFF_NOISE:OFF_NOISE + LATENT_DIM]

    # Decoder d1 state-half depends only on the input slab: compute it early
    # so its MXU pushes can fill the encoder chain's fill-latency bubbles.
    d1_state = mmb(x_in, wd1s_ref[...]) + bias(OFF_BD1, HIDDEN)

    # ----- encoder: single fused K=128 matmul (padded we1 rows are zero) -----
    h = jnp.maximum(mmb(x_in, we1_ref[...]) + bias(OFF_BE1, HIDDEN), 0.0)
    h = jnp.maximum(mmb(h, w_hidden_ref[0]) + bias(OFF_BE2, HIDDEN), 0.0)
    h = jnp.maximum(mmb(h, w_hidden_ref[1]) + bias(OFF_BE3, HIDDEN), 0.0)

    # ----- fused latent heads (f32 weights: exp amplifies bf16 error) -----
    heads = jnp.dot(h, w_heads_ref[...], preferred_element_type=f32)
    heads = heads + bias(OFF_BHEADS, 2 * LATENT_DIM)
    raw_mean = heads[:, 0:LATENT_DIM]
    log_std = jnp.clip(heads[:, LATENT_DIM:2 * LATENT_DIM], -4.0, 4.0)

    # ----- BatchNorm1d, training mode: per-minibatch stats, biased var -----
    mu = jnp.mean(raw_mean, axis=0, keepdims=True)
    diff = raw_mean - mu
    var = jnp.mean(diff * diff, axis=0, keepdims=True)
    xhat = diff * jax.lax.rsqrt(var + BN_EPS)
    mean_bn = xhat * bias(OFF_BNW, LATENT_DIM) + bias(OFF_BNB, LATENT_DIM)

    # ----- reparameterization -----
    std = jnp.exp(log_std)
    z = mean_bn + std * noise

    # ----- decoder (state half precomputed above) -----
    a = jnp.maximum(d1_state + mmb(z, wd1z_ref[...]), 0.0)
    a = jnp.maximum(mmb(a, w_hidden_ref[2]) + bias(OFF_BD2, HIDDEN), 0.0)
    a = jnp.maximum(mmb(a, w_hidden_ref[3]) + bias(OFF_BD3, HIDDEN), 0.0)
    a = mmb(a, wd4_ref[...]) + bias(OFF_BD4, ACTION_DIM)
    u = MAX_ACTION * jnp.tanh(a)

    # ----- 128-aligned output sections: no lane rotates, three stores -----
    out_ref[:, OFF_OUT_U:OFF_OUT_U + ACTION_DIM] = u
    out_ref[:, OFF_OUT_MEAN:OFF_OUT_MEAN + LATENT_DIM] = mean_bn
    out_ref[:, OFF_OUT_STD:OFF_OUT_STD + LATENT_DIM] = std


# ----------------------------- wrapper ------------------------------------
@partial(jax.jit, static_argnames=("mb_size",))
def bnvae_forward(state, action, noise, params, mb_size=MB):
    total = state.shape[0]
    assert total % mb_size == 0, "batch must be a multiple of the minibatch size"
    n_mb = total // mb_size

    # Pack [state | action | noise | 0-pad] into one lane-dense f32 slab.
    pad = jnp.zeros(
        (total, IN_LANES - (STATE_DIM + ACTION_DIM + LATENT_DIM)), jnp.float32)
    in_slab = jnp.concatenate([state, action, noise, pad], axis=1)

    def resident(arr):
        # Weight stays VMEM-resident: constant block index across grid steps.
        zeros = (0,) * arr.ndim
        return pl.BlockSpec(arr.shape, lambda i, zeros=zeros: zeros)

    weight_args = (
        params["we1_pad"], params["w_hidden"], params["w_heads"],
        params["wd1s_pad"], params["wd1z"], params["wd4"],
        params["bias_slab"],
    )

    in_specs = [pl.BlockSpec((mb_size, IN_LANES), lambda i: (i, 0))]
    in_specs += [resident(w) for w in weight_args]

    packed = pl.pallas_call(
        bnvae_kernel,
        out_shape=jax.ShapeDtypeStruct((total, OUT_WIDTH), jnp.float32),
        grid=(n_mb,),
        in_specs=in_specs,
        out_specs=pl.BlockSpec((mb_size, OUT_WIDTH), lambda i: (i, 0)),
        compiler_params=pltpu.CompilerParams(
            dimension_semantics=("parallel",)),
    )(in_slab, *weight_args)

    u = packed[:, OFF_OUT_U:OFF_OUT_U + ACTION_DIM]
    mean = packed[:, OFF_OUT_MEAN:OFF_OUT_MEAN + LATENT_DIM]
    std = packed[:, OFF_OUT_STD:OFF_OUT_STD + LATENT_DIM]
    return u, mean, std


# --------------------- deterministic parameter init -----------------------
def init_params(key):
    """Raw float32 parameters with PyTorch nn.Linear default init."""
    def linear_init(k, fan_in, fan_out):
        k1, k2 = jax.random.split(k)
        bound = 1.0 / math.sqrt(fan_in)
        w = jax.random.uniform(k1, (fan_in, fan_out), jnp.float32, -bound, bound)
        b = jax.random.uniform(k2, (fan_out,), jnp.float32, -bound, bound)
        return w, b

    keys = jax.random.split(key, 9)
    p = {}
    p["we1"], p["be1"] = linear_init(keys[0], STATE_DIM + ACTION_DIM, HIDDEN)
    p["we2"], p["be2"] = linear_init(keys[1], HIDDEN, HIDDEN)
    p["we3"], p["be3"] = linear_init(keys[2], HIDDEN, HIDDEN)
    p["wm"],  p["bm"]  = linear_init(keys[3], HIDDEN, LATENT_DIM)
    p["wls"], p["bls"] = linear_init(keys[4], HIDDEN, LATENT_DIM)
    p["wd1"], p["bd1"] = linear_init(keys[5], STATE_DIM + LATENT_DIM, HIDDEN)
    p["wd2"], p["bd2"] = linear_init(keys[6], HIDDEN, HIDDEN)
    p["wd3"], p["bd3"] = linear_init(keys[7], HIDDEN, HIDDEN)
    p["wd4"], p["bd4"] = linear_init(keys[8], HIDDEN, ACTION_DIM)
    # BatchNorm_v1: weight init 1.0, bias filled with tau.
    p["bn_w"] = jnp.ones((LATENT_DIM,), jnp.float32)
    p["bn_b"] = jnp.full((LATENT_DIM,), BN_WEIGHT, jnp.float32)
    return p


def pack_params(raw):
    """Repack raw f32 params into the kernel's bf16 / slab layout."""
    bf16 = jnp.bfloat16
    p = {}

    # e1 zero-padded to K=128 so one matmul against the input slab computes
    # state@we1_s + action@we1_a (noise / pad lanes hit zero rows).
    we1_pad = jnp.zeros((IN_LANES, HIDDEN), jnp.float32)
    we1_pad = we1_pad.at[0:STATE_DIM + ACTION_DIM, :].set(raw["we1"])
    p["we1_pad"] = we1_pad.astype(bf16)

    # d1 state-half, same padding trick (action/noise/pad lanes zeroed out).
    wd1s_pad = jnp.zeros((IN_LANES, HIDDEN), jnp.float32)
    wd1s_pad = wd1s_pad.at[0:STATE_DIM, :].set(raw["wd1"][0:STATE_DIM, :])
    p["wd1s_pad"] = wd1s_pad.astype(bf16)
    p["wd1z"] = raw["wd1"][STATE_DIM:, :].astype(bf16)

    p["w_hidden"] = jnp.stack(
        [raw["we2"], raw["we3"], raw["wd2"], raw["wd3"]], axis=0).astype(bf16)
    # Latent heads stay f32 (exp / BN statistics are precision-sensitive).
    p["w_heads"] = jnp.concatenate([raw["wm"], raw["wls"]], axis=1)
    p["wd4"] = raw["wd4"].astype(bf16)

    slab = jnp.zeros((BIAS_SLAB,), jnp.float32)

    def put(s, off, v):
        return jax.lax.dynamic_update_slice(s, v, (off,))

    slab = put(slab, OFF_BE1, raw["be1"])
    slab = put(slab, OFF_BE2, raw["be2"])
    slab = put(slab, OFF_BE3, raw["be3"])
    slab = put(slab, OFF_BD1, raw["bd1"])
    slab = put(slab, OFF_BD2, raw["bd2"])
    slab = put(slab, OFF_BD3, raw["bd3"])
    slab = put(slab, OFF_BHEADS, jnp.concatenate([raw["bm"], raw["bls"]]))
    slab = put(slab, OFF_BNW, raw["bn_w"])
    slab = put(slab, OFF_BNB, raw["bn_b"])
    slab = put(slab, OFF_BD4, raw["bd4"])
    p["bias_slab"] = slab.reshape(1, BIAS_SLAB)
    return p


# ----------------------- pure-JAX reference (f32) --------------------------
def bnvae_reference(state, action, noise, p, mb_size):
    """Per-minibatch BN statistics (one minibatch == one forward call)."""
    def one(s, a, n):
        relu = jax.nn.relu
        h = relu(jnp.concatenate([s, a], 1) @ p["we1"] + p["be1"])
        h = relu(h @ p["we2"] + p["be2"])
        h = relu(h @ p["we3"] + p["be3"])
        m = h @ p["wm"] + p["bm"]
        mu = jnp.mean(m, axis=0, keepdims=True)
        var = jnp.mean((m - mu) ** 2, axis=0, keepdims=True)
        m = (m - mu) / jnp.sqrt(var + BN_EPS) * p["bn_w"] + p["bn_b"]
        log_std = jnp.clip(h @ p["wls"] + p["bls"], -4.0, 4.0)
        std = jnp.exp(log_std)
        z = m + std * n
        d = relu(jnp.concatenate([s, z], 1) @ p["wd1"] + p["bd1"])
        d = relu(d @ p["wd2"] + p["bd2"])
        d = relu(d @ p["wd3"] + p["bd3"])
        d = d @ p["wd4"] + p["bd4"]
        return MAX_ACTION * jnp.tanh(d), m, std

    n_mb = state.shape[0] // mb_size
    rs = lambda x: x.reshape(n_mb, mb_size, x.shape[-1])
    u, m, s = jax.vmap(one)(rs(state), rs(action), rs(noise))
    flat = lambda x: x.reshape(n_mb * mb_size, x.shape[-1])
    return flat(u), flat(m), flat(s)


if __name__ == "__main__":
    key = jax.random.PRNGKey(0)
    k_p, k_s, k_a, k_n = jax.random.split(key, 4)
    raw = init_params(k_p)
    params = pack_params(raw)

    total = N_MB * MB
    state = jax.random.normal(k_s, (total, STATE_DIM), jnp.float32)
    action = jax.random.normal(k_a, (total, ACTION_DIM), jnp.float32)
    # torch.randn_like(std) has no deterministic JAX twin; draw noise here.
    noise = jax.random.normal(k_n, (total, LATENT_DIM), jnp.float32)

    u, mean, std = jax.block_until_ready(
        bnvae_forward(state, action, noise, params, mb_size=MB))
    u_r, mean_r, std_r = bnvae_reference(state, action, noise, raw, MB)

    # bf16 hidden weights (f32 accumulation, f32 heads) vs pure-f32 reference.
    assert jnp.allclose(u, u_r, rtol=5e-2, atol=5e-2), "u mismatch"
    assert jnp.allclose(mean, mean_r, rtol=5e-2, atol=5e-2), "mean mismatch"
    assert jnp.allclose(std, std_r, rtol=5e-2, atol=5e-2), "std mismatch"
    print("KERNEL_OK")
</pallas_src>

<mosaic_0001>
module attributes {stable_mosaic.version = 11 : i64} {
  func.func @bnvae_kernel(%arg0: i32, %arg1: memref<8x128xf32, #tpu.memory_space<vmem>>, %arg2: memref<128x256xbf16, #tpu.memory_space<vmem>>, %arg3: memref<4x256x256xbf16, #tpu.memory_space<vmem>>, %arg4: memref<256x16xf32, #tpu.memory_space<vmem>>, %arg5: memref<128x256xbf16, #tpu.memory_space<vmem>>, %arg6: memref<8x256xbf16, #tpu.memory_space<vmem>>, %arg7: memref<256x4xbf16, #tpu.memory_space<vmem>>, %arg8: memref<1x2048xf32, #tpu.memory_space<vmem>>, %arg9: memref<8x384xf32, #tpu.memory_space<vmem>>) attributes {dimension_semantics = [#tpu.dimension_semantics<parallel>], iteration_bounds = array<i64: 4>, scalar_prefetch = 0 : i64, scratch_operands = 0 : i64, tpu.core_type = #tpu.core_type<tc>, window_params = [{transform_indices = @transform_0, window_bounds = array<i64: 8, 128>}, {pipeline_mode = #tpu.pipeline_mode<synchronous>, transform_indices = @transform_1, window_bounds = array<i64: 128, 256>}, {pipeline_mode = #tpu.pipeline_mode<synchronous>, transform_indices = @transform_2, window_bounds = array<i64: 4, 256, 256>}, {pipeline_mode = #tpu.pipeline_mode<synchronous>, transform_indices = @transform_3, window_bounds = array<i64: 256, 16>}, {pipeline_mode = #tpu.pipeline_mode<synchronous>, transform_indices = @transform_4, window_bounds = array<i64: 128, 256>}, {pipeline_mode = #tpu.pipeline_mode<synchronous>, transform_indices = @transform_5, window_bounds = array<i64: 8, 256>}, {pipeline_mode = #tpu.pipeline_mode<synchronous>, transform_indices = @transform_6, window_bounds = array<i64: 256, 4>}, {pipeline_mode = #tpu.pipeline_mode<synchronous>, transform_indices = @transform_7, window_bounds = array<i64: 1, 2048>}, {transform_indices = @transform_8, window_bounds = array<i64: 8, 384>}]} {
    %c0 = arith.constant 0 : index
    %c0_0 = arith.constant 0 : index
    %0 = vector.load %arg1[%c0, %c0_0] : memref<8x128xf32, #tpu.memory_space<vmem>>, vector<8x128xf32>
    %1 = vector.extract_strided_slice %0 {offsets = [0, 20], sizes = [8, 8], strides = [1, 1]} : vector<8x128xf32> to vector<8x8xf32>
    %c0_1 = arith.constant 0 : index
    %c0_2 = arith.constant 0 : index
    %2 = vector.load %arg5[%c0_1, %c0_2] : memref<128x256xbf16, #tpu.memory_space<vmem>>, vector<128x256xbf16>
    %3 = arith.truncf %0 : vector<8x128xf32> to vector<8x128xbf16>
    %cst = arith.constant dense<0.000000e+00> : vector<8x256xf32>
    %4 = tpu.matmul %3, %2, %cst {dimension_numbers = #tpu.dot_dimension_numbers<[1], [0], [0], [1], [0, 0, 1, 1], [], []>} : vector<8x128xbf16>, vector<128x256xbf16>, vector<8x256xf32> -> vector<8x256xf32>
    %c0_3 = arith.constant 0 : index
    %c768 = arith.constant 768 : index
    %5 = vector.load %arg8[%c0_3, %c768] : memref<1x2048xf32, #tpu.memory_space<vmem>>, vector<1x256xf32>
    %6 = vector.broadcast %5 : vector<1x256xf32> to vector<8x256xf32>
    %7 = arith.addf %4, %6 : vector<8x256xf32>
    %c0_4 = arith.constant 0 : index
    %c0_5 = arith.constant 0 : index
    %8 = vector.load %arg2[%c0_4, %c0_5] : memref<128x256xbf16, #tpu.memory_space<vmem>>, vector<128x256xbf16>
    %9 = arith.truncf %0 : vector<8x128xf32> to vector<8x128xbf16>
    %cst_6 = arith.constant dense<0.000000e+00> : vector<8x256xf32>
    %10 = tpu.matmul %9, %8, %cst_6 {dimension_numbers = #tpu.dot_dimension_numbers<[1], [0], [0], [1], [0, 0, 1, 1], [], []>} : vector<8x128xbf16>, vector<128x256xbf16>, vector<8x256xf32> -> vector<8x256xf32>
    %c0_7 = arith.constant 0 : index
    %c0_8 = arith.constant 0 : index
    %11 = vector.load %arg8[%c0_7, %c0_8] : memref<1x2048xf32, #tpu.memory_space<vmem>>, vector<1x256xf32>
    %12 = vector.broadcast %11 : vector<1x256xf32> to vector<8x256xf32>
    %13 = arith.addf %10, %12 : vector<8x256xf32>
    %cst_9 = arith.constant 0.000000e+00 : f32
    %14 = vector.broadcast %cst_9 : f32 to vector<8x256xf32>
    %15 = arith.maximumf %13, %14 : vector<8x256xf32>
    %c0_10 = arith.constant 0 : index
    %c0_11 = arith.constant 0 : index
    %c0_12 = arith.constant 0 : index
    %16 = vector.load %arg3[%c0_10, %c0_11, %c0_12] : memref<4x256x256xbf16, #tpu.memory_space<vmem>>, vector<1x256x256xbf16>
    %17 = vector.shape_cast %16 : vector<1x256x256xbf16> to vector<256x256xbf16>
    %18 = arith.truncf %15 : vector<8x256xf32> to vector<8x256xbf16>
    %cst_13 = arith.constant dense<0.000000e+00> : vector<8x256xf32>
    %19 = tpu.matmul %18, %17, %cst_13 {dimension_numbers = #tpu.dot_dimension_numbers<[1], [0], [0], [1], [0, 0, 1, 1], [], []>} : vector<8x256xbf16>, vector<256x256xbf16>, vector<8x256xf32> -> vector<8x256xf32>
    %c0_14 = arith.constant 0 : index
    %c256 = arith.constant 256 : index
    %20 = vector.load %arg8[%c0_14, %c256] : memref<1x2048xf32, #tpu.memory_space<vmem>>, vector<1x256xf32>
    %21 = vector.broadcast %20 : vector<1x256xf32> to vector<8x256xf32>
    %22 = arith.addf %19, %21 : vector<8x256xf32>
    %cst_15 = arith.constant 0.000000e+00 : f32
    %23 = vector.broadcast %cst_15 : f32 to vector<8x256xf32>
    %24 = arith.maximumf %22, %23 : vector<8x256xf32>
    %c1 = arith.constant 1 : index
    %c0_16 = arith.constant 0 : index
    %c0_17 = arith.constant 0 : index
    %25 = vector.load %arg3[%c1, %c0_16, %c0_17] : memref<4x256x256xbf16, #tpu.memory_space<vmem>>, vector<1x256x256xbf16>
    %26 = vector.shape_cast %25 : vector<1x256x256xbf16> to vector<256x256xbf16>
    %27 = arith.truncf %24 : vector<8x256xf32> to vector<8x256xbf16>
    %cst_18 = arith.constant dense<0.000000e+00> : vector<8x256xf32>
    %28 = tpu.matmul %27, %26, %cst_18 {dimension_numbers = #tpu.dot_dimension_numbers<[1], [0], [0], [1], [0, 0, 1, 1], [], []>} : vector<8x256xbf16>, vector<256x256xbf16>, vector<8x256xf32> -> vector<8x256xf32>
    %c0_19 = arith.constant 0 : index
    %c512 = arith.constant 512 : index
    %29 = vector.load %arg8[%c0_19, %c512] : memref<1x2048xf32, #tpu.memory_space<vmem>>, vector<1x256xf32>
    %30 = vector.broadcast %29 : vector<1x256xf32> to vector<8x256xf32>
    %31 = arith.addf %28, %30 : vector<8x256xf32>
    %cst_20 = arith.constant 0.000000e+00 : f32
    %32 = vector.broadcast %cst_20 : f32 to vector<8x256xf32>
    %33 = arith.maximumf %31, %32 : vector<8x256xf32>
    %c0_21 = arith.constant 0 : index
    %c0_22 = arith.constant 0 : index
    %34 = vector.load %arg4[%c0_21, %c0_22] : memref<256x16xf32, #tpu.memory_space<vmem>>, vector<256x16xf32>
    %cst_23 = arith.constant dense<0.000000e+00> : vector<8x16xf32>
    %35 = tpu.matmul %33, %34, %cst_23 {dimension_numbers = #tpu.dot_dimension_numbers<[1], [0], [0], [1], [0, 0, 1, 1], [], []>} : vector<8x256xf32>, vector<256x16xf32>, vector<8x16xf32> -> vector<8x16xf32>
    %c0_24 = arith.constant 0 : index
    %c1536 = arith.constant 1536 : index
    %36 = vector.load %arg8[%c0_24, %c1536] : memref<1x2048xf32, #tpu.memory_space<vmem>>, vector<1x16xf32>
    %37 = vector.broadcast %36 : vector<1x16xf32> to vector<8x16xf32>
    %38 = arith.addf %35, %37 : vector<8x16xf32>
    %39 = vector.extract_strided_slice %38 {offsets = [0, 0], sizes = [8, 8], strides = [1, 1]} : vector<8x16xf32> to vector<8x8xf32>
    %40 = vector.extract_strided_slice %38 {offsets = [0, 8], sizes = [8, 8], strides = [1, 1]} : vector<8x16xf32> to vector<8x8xf32>
    %cst_25 = arith.constant -4.000000e+00 : f32
    %cst_26 = arith.constant 4.000000e+00 : f32
    %41 = vector.broadcast %cst_25 : f32 to vector<8x8xf32>
    %42 = arith.maximumf %41, %40 : vector<8x8xf32>
    %43 = vector.broadcast %cst_26 : f32 to vector<8x8xf32>
    %44 = arith.minimumf %43, %42 : vector<8x8xf32>
    %cst_27 = arith.constant dense<0.000000e+00> : vector<8xf32>
    %45 = vector.multi_reduction <add>, %39, %cst_27 [0] : vector<8x8xf32> to vector<8xf32>
    %46 = vector.shape_cast %45 : vector<8xf32> to vector<1x8xf32>
    %cst_28 = arith.constant 8.000000e+00 : f32
    %47 = vector.broadcast %cst_28 : f32 to vector<1x8xf32>
    %48 = arith.divf %46, %47 : vector<1x8xf32>
    %49 = vector.broadcast %48 : vector<1x8xf32> to vector<8x8xf32>
    %50 = arith.subf %39, %49 : vector<8x8xf32>
    %51 = arith.mulf %50, %50 : vector<8x8xf32>
    %cst_29 = arith.constant dense<0.000000e+00> : vector<8xf32>
    %52 = vector.multi_reduction <add>, %51, %cst_29 [0] : vector<8x8xf32> to vector<8xf32>
    %53 = vector.shape_cast %52 : vector<8xf32> to vector<1x8xf32>
    %cst_30 = arith.constant 8.000000e+00 : f32
    %54 = vector.broadcast %cst_30 : f32 to vector<1x8xf32>
    %55 = arith.divf %53, %54 : vector<1x8xf32>
    %cst_31 = arith.constant 9.99999974E-6 : f32
    %56 = vector.broadcast %cst_31 : f32 to vector<1x8xf32>
    %57 = arith.addf %55, %56 : vector<1x8xf32>
    %58 = math.rsqrt %57 : vector<1x8xf32>
    %59 = vector.broadcast %58 : vector<1x8xf32> to vector<8x8xf32>
    %60 = arith.mulf %50, %59 : vector<8x8xf32>
    %c0_32 = arith.constant 0 : index
    %c1664 = arith.constant 1664 : index
    %61 = vector.load %arg8[%c0_32, %c1664] : memref<1x2048xf32, #tpu.memory_space<vmem>>, vector<1x8xf32>
    %62 = vector.broadcast %61 : vector<1x8xf32> to vector<8x8xf32>
    %63 = arith.mulf %60, %62 : vector<8x8xf32>
    %c0_33 = arith.constant 0 : index
    %c1792 = arith.constant 1792 : index
    %64 = vector.load %arg8[%c0_33, %c1792] : memref<1x2048xf32, #tpu.memory_space<vmem>>, vector<1x8xf32>
    %65 = vector.broadcast %64 : vector<1x8xf32> to vector<8x8xf32>
    %66 = arith.addf %63, %65 : vector<8x8xf32>
    %67 = math.exp %44 : vector<8x8xf32>
    %68 = arith.mulf %67, %1 : vector<8x8xf32>
    %69 = arith.addf %66, %68 : vector<8x8xf32>
    %c0_34 = arith.constant 0 : index
    %c0_35 = arith.constant 0 : index
    %70 = vector.load %arg6[%c0_34, %c0_35] : memref<8x256xbf16, #tpu.memory_space<vmem>>, vector<8x256xbf16>
    %71 = arith.truncf %69 : vector<8x8xf32> to vector<8x8xbf16>
    %cst_36 = arith.constant dense<0.000000e+00> : vector<8x256xf32>
    %72 = tpu.matmul %71, %70, %cst_36 {dimension_numbers = #tpu.dot_dimension_numbers<[1], [0], [0], [1], [0, 0, 1, 1], [], []>} : vector<8x8xbf16>, vector<8x256xbf16>, vector<8x256xf32> -> vector<8x256xf32>
    %73 = arith.addf %7, %72 : vector<8x256xf32>
    %cst_37 = arith.constant 0.000000e+00 : f32
    %74 = vector.broadcast %cst_37 : f32 to vector<8x256xf32>
    %75 = arith.maximumf %73, %74 : vector<8x256xf32>
    %c2 = arith.constant 2 : index
    %c0_38 = arith.constant 0 : index
    %c0_39 = arith.constant 0 : index
    %76 = vector.load %arg3[%c2, %c0_38, %c0_39] : memref<4x256x256xbf16, #tpu.memory_space<vmem>>, vector<1x256x256xbf16>
    %77 = vector.shape_cast %76 : vector<1x256x256xbf16> to vector<256x256xbf16>
    %78 = arith.truncf %75 : vector<8x256xf32> to vector<8x256xbf16>
    %cst_40 = arith.constant dense<0.000000e+00> : vector<8x256xf32>
    %79 = tpu.matmul %78, %77, %cst_40 {dimension_numbers = #tpu.dot_dimension_numbers<[1], [0], [0], [1], [0, 0, 1, 1], [], []>} : vector<8x256xbf16>, vector<256x256xbf16>, vector<8x256xf32> -> vector<8x256xf32>
    %c0_41 = arith.constant 0 : index
    %c1024 = arith.constant 1024 : index
    %80 = vector.load %arg8[%c0_41, %c1024] : memref<1x2048xf32, #tpu.memory_space<vmem>>, vector<1x256xf32>
    %81 = vector.broadcast %80 : vector<1x256xf32> to vector<8x256xf32>
    %82 = arith.addf %79, %81 : vector<8x256xf32>
    %cst_42 = arith.constant 0.000000e+00 : f32
    %83 = vector.broadcast %cst_42 : f32 to vector<8x256xf32>
    %84 = arith.maximumf %82, %83 : vector<8x256xf32>
    %c3 = arith.constant 3 : index
    %c0_43 = arith.constant 0 : index
    %c0_44 = arith.constant 0 : index
    %85 = vector.load %arg3[%c3, %c0_43, %c0_44] : memref<4x256x256xbf16, #tpu.memory_space<vmem>>, vector<1x256x256xbf16>
    %86 = vector.shape_cast %85 : vector<1x256x256xbf16> to vector<256x256xbf16>
    %87 = arith.truncf %84 : vector<8x256xf32> to vector<8x256xbf16>
    %cst_45 = arith.constant dense<0.000000e+00> : vector<8x256xf32>
    %88 = tpu.matmul %87, %86, %cst_45 {dimension_numbers = #tpu.dot_dimension_numbers<[1], [0], [0], [1], [0, 0, 1, 1], [], []>} : vector<8x256xbf16>, vector<256x256xbf16>, vector<8x256xf32> -> vector<8x256xf32>
    %c0_46 = arith.constant 0 : index
    %c1280 = arith.constant 1280 : index
    %89 = vector.load %arg8[%c0_46, %c1280] : memref<1x2048xf32, #tpu.memory_space<vmem>>, vector<1x256xf32>
    %90 = vector.broadcast %89 : vector<1x256xf32> to vector<8x256xf32>
    %91 = arith.addf %88, %90 : vector<8x256xf32>
    %cst_47 = arith.constant 0.000000e+00 : f32
    %92 = vector.broadcast %cst_47 : f32 to vector<8x256xf32>
    %93 = arith.maximumf %91, %92 : vector<8x256xf32>
    %c0_48 = arith.constant 0 : index
    %c0_49 = arith.constant 0 : index
    %94 = vector.load %arg7[%c0_48, %c0_49] : memref<256x4xbf16, #tpu.memory_space<vmem>>, vector<256x4xbf16>
    %95 = arith.truncf %93 : vector<8x256xf32> to vector<8x256xbf16>
    %cst_50 = arith.constant dense<0.000000e+00> : vector<8x4xf32>
    %96 = tpu.matmul %95, %94, %cst_50 {dimension_numbers = #tpu.dot_dimension_numbers<[1], [0], [0], [1], [0, 0, 1, 1], [], []>} : vector<8x256xbf16>, vector<256x4xbf16>, vector<8x4xf32> -> vector<8x4xf32>
    %c0_51 = arith.constant 0 : index
    %c1920 = arith.constant 1920 : index
    %97 = vector.load %arg8[%c0_51, %c1920] : memref<1x2048xf32, #tpu.memory_space<vmem>>, vector<1x4xf32>
    %98 = vector.broadcast %97 : vector<1x4xf32> to vector<8x4xf32>
    %99 = arith.addf %96, %98 : vector<8x4xf32>
    %100 = math.tanh %99 : vector<8x4xf32>
    %cst_52 = arith.constant 1.000000e+00 : f32
    %101 = vector.broadcast %cst_52 : f32 to vector<8x4xf32>
    %102 = arith.mulf %101, %100 : vector<8x4xf32>
    %c0_53 = arith.constant 0 : index
    %c0_54 = arith.constant 0 : index
    %103 = vector.load %arg9[%c0_53, %c0_54] : memref<8x384xf32, #tpu.memory_space<vmem>>, vector<8x4xf32>
    tpu.vector_store %arg9[%c0_53, %c0_54], %102 {strides = array<i32>} : memref<8x384xf32, #tpu.memory_space<vmem>>, vector<8x4xf32>,
    %c0_55 = arith.constant 0 : index
    %c128 = arith.constant 128 : index
    %104 = vector.load %arg9[%c0_55, %c128] : memref<8x384xf32, #tpu.memory_space<vmem>>, vector<8x8xf32>
    tpu.vector_store %arg9[%c0_55, %c128], %66 {strides = array<i32>} : memref<8x384xf32, #tpu.memory_space<vmem>>, vector<8x8xf32>,
    %c0_56 = arith.constant 0 : index
    %c256_57 = arith.constant 256 : index
    %105 = vector.load %arg9[%c0_56, %c256_57] : memref<8x384xf32, #tpu.memory_space<vmem>>, vector<8x8xf32>
    tpu.vector_store %arg9[%c0_56, %c256_57], %67 {strides = array<i32>} : memref<8x384xf32, #tpu.memory_space<vmem>>, vector<8x8xf32>,
    return
  }
  func.func @transform_0(%arg0: i32) -> (i32, i32) {
    %c0_i32 = arith.constant 0 : i32
    %c0_i32_0 = arith.constant 0 : i32
    return %arg0, %c0_i32 : i32, i32
  }
  func.func @transform_1(%arg0: i32) -> (i32, i32) {
    %c0_i32 = arith.constant 0 : i32
    %c0_i32_0 = arith.constant 0 : i32
    %c0_i32_1 = arith.constant 0 : i32
    return %c0_i32, %c0_i32_0 : i32, i32
  }
  func.func @transform_2(%arg0: i32) -> (i32, i32, i32) {
    %c0_i32 = arith.constant 0 : i32
    %c0_i32_0 = arith.constant 0 : i32
    %c0_i32_1 = arith.constant 0 : i32
    %c0_i32_2 = arith.constant 0 : i32
    return %c0_i32, %c0_i32_0, %c0_i32_1 : i32, i32, i32
  }
  func.func @transform_3(%arg0: i32) -> (i32, i32) {
    %c0_i32 = arith.constant 0 : i32
    %c0_i32_0 = arith.constant 0 : i32
    %c0_i32_1 = arith.constant 0 : i32
    return %c0_i32, %c0_i32_0 : i32, i32
  }
  func.func @transform_4(%arg0: i32) -> (i32, i32) {
    %c0_i32 = arith.constant 0 : i32
    %c0_i32_0 = arith.constant 0 : i32
    %c0_i32_1 = arith.constant 0 : i32
    return %c0_i32, %c0_i32_0 : i32, i32
  }
  func.func @transform_5(%arg0: i32) -> (i32, i32) {
    %c0_i32 = arith.constant 0 : i32
    %c0_i32_0 = arith.constant 0 : i32
    %c0_i32_1 = arith.constant 0 : i32
    return %c0_i32, %c0_i32_0 : i32, i32
  }
  func.func @transform_6(%arg0: i32) -> (i32, i32) {
    %c0_i32 = arith.constant 0 : i32
    %c0_i32_0 = arith.constant 0 : i32
    %c0_i32_1 = arith.constant 0 : i32
    return %c0_i32, %c0_i32_0 : i32, i32
  }
  func.func @transform_7(%arg0: i32) -> (i32, i32) {
    %c0_i32 = arith.constant 0 : i32
    %c0_i32_0 = arith.constant 0 : i32
    %c0_i32_1 = arith.constant 0 : i32
    return %c0_i32, %c0_i32_0 : i32, i32
  }
  func.func @transform_8(%arg0: i32) -> (i32, i32) {
    %c0_i32 = arith.constant 0 : i32
    %c0_i32_0 = arith.constant 0 : i32
    return %arg0, %c0_i32 : i32, i32
  }
}

</mosaic_0001>

<llo_original>
// kernel: bnvae_forward.1
$region0: #{bnvae_forward.1}
  #allocation0 [shape = 'u32[]', space=smem, size = 0x4, offset = 0x4, fixed_abs, tag = 'smem constant byte address 0x4 - core index']
  #allocation1 [shape = 'u32[144,128]{1,0:T(1,128)}', space=vmem, size = 0x12000, scoped, tag = 'internal scratch']
  %s0 = inlined_call_operand.vmem [shape: f32[32,128], index: 0, kind: input, shape index: {}]
  %s1 = inlined_call_operand.vmem [shape: bf16[128,256], index: 1, kind: input, shape index: {}]
  %s2 = inlined_call_operand.hbm [shape: bf16[4,256,256], index: 2, kind: input, shape index: {}]
  %s3 = inlined_call_operand.vmem [shape: f32[256,16], index: 3, kind: input, shape index: {}]
  %s4 = inlined_call_operand.vmem [shape: bf16[128,256], index: 4, kind: input, shape index: {}]
  %s5 = inlined_call_operand.vmem [shape: bf16[8,256], index: 5, kind: input, shape index: {}]
  %s6 = inlined_call_operand.vmem [shape: bf16[256,4], index: 6, kind: input, shape index: {}]
  %s7 = inlined_call_operand.vmem [shape: f32[1,2048], index: 7, kind: input, shape index: {}]
  %s8 = inlined_call_operand.vmem [shape: f32[32,384], index: 8, kind: output, shape index: {}]
  %s9 = sld [smem:[#allocation0]]
  $region69: #{bnvae_forward.1} parent=0
    _
  %s11 = ssub.s32 1, %s9
  %s12 = scalar_select 0, %s11, %s9
  $region1: #{bnvae_forward.1} parent=0
    #allocation2 [shape = 'u8[524288]{0}', space=vmem, size = 0x80000, scoped, tag = 'input window, operand 2, single buffered']
    #allocation3 [shape = 's32[2]{0}', space=sflag, size = 0x8, scoped, tag = 'scoped memory for bnvae_forward.1']
    %13 = vsyncpa [#allocation3], 0
    loop: start=0, step=1, limit=6
    $region2: #{bnvae_forward.1} parent=1 // loop_pre_header
      _
    $region3: #{bnvae_forward.1} parent=1 // loop_header
      %s15 = sphi 0, %s19
      %p16 = scmp.ge.s32.totalorder %s15, 6
      %s25 = sphi 0, %s27
      %s28 = sphi 0, %s25
      %s29 = sphi 0, %s28
      %s45 = sphi 0, %s29
      %s49 = sphi 0, %s49
      %s51 = sphi 0, %s49
      %s52 = sphi 0, %s51
      %s66 = sphi 0, %s52
      %s70 = sphi 0, %s70
      %s72 = sphi 0, %s70
      %s73 = sphi 0, %s72
      %s87 = sphi 0, %s73
      %s91 = sphi 0, %s91
      %s93 = sphi 0, %s91
      %s94 = sphi 0, %s93
      %s108 = sphi 0, %s94
      %s112 = sphi 0, %s112
      %s114 = sphi 0, %s112
      %s115 = sphi 0, %s114
      %s129 = sphi 0, %s115
      %s133 = sphi 0, %s133
      %s135 = sphi 0, %s133
      %s136 = sphi 0, %s135
      %s150 = sphi 0, %s136
      %s154 = sphi 0, %s154
      %s156 = sphi 0, %s154
      %s157 = sphi 0, %s156
      %s171 = sphi 0, %s157
      %s175 = sphi 0, %s175
      %s177 = sphi 0, %s175
      %s178 = sphi 0, %s177
      %s192 = sphi 0, %s178
      %s198 = sphi 0, %s200
      %s201 = sphi 0, %s198
      %s202 = sphi 0, %s201
      %s218 = sphi 0, %s202
    $region4: #{bnvae_forward.1} parent=1 // loop_header_branch
      %18 = sbr.rel (%p16) target = $region8
    $region5: #{bnvae_forward.1} parent=1 // loop_body
      %s20 = ssub.s32 %s15, 1
      %s21 = ssub.s32 %s15, 2
      %s22 = sadd.s32 %s15, 1
      %s23 = ssub.s32 %s15, %s22
      %p24 = scmp.eq.s32.totalorder %s23, 0
      %s26 = sadd.s32 %s25, 1
      %s27 = scalar_select %p24, %s25, %s26
      %p30 = pneg %p24
      %p31 = scmp.eq.s32.totalorder %s15, 3
      %p32 = por %p30, %p31
      %p33 = scmp.ne.s32.totalorder %s25, %s28
      %p34 = scmp.eq.s32.totalorder %s15, 0
      %p35 = por %p33, %p34
      %p36 = scmp.ne.s32.totalorder %s25, %s28
      %p37 = scmp.eq.s32.totalorder %s20, 3
      %p38 = por %p36, %p37
      %p39 = scmp.ne.s32.totalorder %s28, %s29
      %p40 = scmp.eq.s32.totalorder %s20, 0
      %p41 = por %p39, %p40
      %p42 = scmp.ne.s32.totalorder %s28, %s29
      %p43 = scmp.eq.s32.totalorder %s21, 3
      %p44 = por %p42, %p43
      %p46 = scmp.ne.s32.totalorder %s29, %s45
      %p47 = scmp.eq.s32.totalorder %s21, 0
      %p48 = por %p46, %p47
      %s50 = sadd.s32 %s49, 1
      %p53 = scmp.eq.s32.totalorder %s15, 3
      %p54 = scmp.ne.s32.totalorder %s49, %s51
      %p55 = scmp.eq.s32.totalorder %s15, 0
      %p56 = por %p54, %p55
      %p57 = scmp.ne.s32.totalorder %s49, %s51
      %p58 = scmp.eq.s32.totalorder %s20, 3
      %p59 = por %p57, %p58
      %p60 = scmp.ne.s32.totalorder %s51, %s52
      %p61 = scmp.eq.s32.totalorder %s20, 0
      %p62 = por %p60, %p61
      %p63 = scmp.ne.s32.totalorder %s51, %s52
      %p64 = scmp.eq.s32.totalorder %s21, 3
      %p65 = por %p63, %p64
      %p67 = scmp.ne.s32.totalorder %s52, %s66
      %p68 = scmp.eq.s32.totalorder %s21, 0
      %p69 = por %p67, %p68
      %s71 = sadd.s32 %s70, 1
      %p74 = scmp.eq.s32.totalorder %s15, 3
      %p75 = scmp.ne.s32.totalorder %s70, %s72
      %p76 = scmp.eq.s32.totalorder %s15, 0
      %p77 = por %p75, %p76
      %p78 = scmp.ne.s32.totalorder %s70, %s72
      %p79 = scmp.eq.s32.totalorder %s20, 3
      %p80 = por %p78, %p79
      %p81 = scmp.ne.s32.totalorder %s72, %s73
      %p82 = scmp.eq.s32.totalorder %s20, 0
      %p83 = por %p81, %p82
      %p84 = scmp.ne.s32.totalorder %s72, %s73
      %p85 = scmp.eq.s32.totalorder %s21, 3
      %p86 = por %p84, %p85
      %p88 = scmp.ne.s32.totalorder %s73, %s87
      %p89 = scmp.eq.s32.totalorder %s21, 0
      %p90 = por %p88, %p89
      %s92 = sadd.s32 %s91, 1
      %p95 = scmp.eq.s32.totalorder %s15, 3
      %p96 = scmp.ne.s32.totalorder %s91, %s93
      %p97 = scmp.eq.s32.totalorder %s15, 0
      %p98 = por %p96, %p97
      %p99 = scmp.ne.s32.totalorder %s91, %s93
      %p100 = scmp.eq.s32.totalorder %s20, 3
      %p101 = por %p99, %p100
      %p102 = scmp.ne.s32.totalorder %s93, %s94
      %p103 = scmp.eq.s32.totalorder %s20, 0
      %p104 = por %p102, %p103
      %p105 = scmp.ne.s32.totalorder %s93, %s94
      %p106 = scmp.eq.s32.totalorder %s21, 3
      %p107 = por %p105, %p106
      %p109 = scmp.ne.s32.totalorder %s94, %s108
      %p110 = scmp.eq.s32.totalorder %s21, 0
      %p111 = por %p109, %p110
      %s113 = sadd.s32 %s112, 1
      %p116 = scmp.eq.s32.totalorder %s15, 3
      %p117 = scmp.ne.s32.totalorder %s112, %s114
      %p118 = scmp.eq.s32.totalorder %s15, 0
      %p119 = por %p117, %p118
      %p120 = scmp.ne.s32.totalorder %s112, %s114
      %p121 = scmp.eq.s32.totalorder %s20, 3
      %p122 = por %p120, %p121
      %p123 = scmp.ne.s32.totalorder %s114, %s115
      %p124 = scmp.eq.s32.totalorder %s20, 0
      %p125 = por %p123, %p124
      %p126 = scmp.ne.s32.totalorder %s114, %s115
      %p127 = scmp.eq.s32.totalorder %s21, 3
      %p128 = por %p126, %p127
      %p130 = scmp.ne.s32.totalorder %s115, %s129
      %p131 = scmp.eq.s32.totalorder %s21, 0
      %p132 = por %p130, %p131
      %s134 = sadd.s32 %s133, 1
      %p137 = scmp.eq.s32.totalorder %s15, 3
      %p138 = scmp.ne.s32.totalorder %s133, %s135
      %p139 = scmp.eq.s32.totalorder %s15, 0
      %p140 = por %p138, %p139
      %p141 = scmp.ne.s32.totalorder %s133, %s135
      %p142 = scmp.eq.s32.totalorder %s20, 3
      %p143 = por %p141, %p142
      %p144 = scmp.ne.s32.totalorder %s135, %s136
      %p145 = scmp.eq.s32.totalorder %s20, 0
      %p146 = por %p144, %p145
      %p147 = scmp.ne.s32.totalorder %s135, %s136
      %p148 = scmp.eq.s32.totalorder %s21, 3
      %p149 = por %p147, %p148
      %p151 = scmp.ne.s32.totalorder %s136, %s150
      %p152 = scmp.eq.s32.totalorder %s21, 0
      %p153 = por %p151, %p152
      %s155 = sadd.s32 %s154, 1
      %p158 = scmp.eq.s32.totalorder %s15, 3
      %p159 = scmp.ne.s32.totalorder %s154, %s156
      %p160 = scmp.eq.s32.totalorder %s15, 0
      %p161 = por %p159, %p160
      %p162 = scmp.ne.s32.totalorder %s154, %s156
      %p163 = scmp.eq.s32.totalorder %s20, 3
      %p164 = por %p162, %p163
      %p165 = scmp.ne.s32.totalorder %s156, %s157
      %p166 = scmp.eq.s32.totalorder %s20, 0
      %p167 = por %p165, %p166
      %p168 = scmp.ne.s32.totalorder %s156, %s157
      %p169 = scmp.eq.s32.totalorder %s21, 3
      %p170 = por %p168, %p169
      %p172 = scmp.ne.s32.totalorder %s157, %s171
      %p173 = scmp.eq.s32.totalorder %s21, 0
      %p174 = por %p172, %p173
      %s176 = sadd.s32 %s175, 1
      %p179 = scmp.eq.s32.totalorder %s15, 3
      %p180 = scmp.ne.s32.totalorder %s175, %s177
      %p181 = scmp.eq.s32.totalorder %s15, 0
      %p182 = por %p180, %p181
      %p183 = scmp.ne.s32.totalorder %s175, %s177
      %p184 = scmp.eq.s32.totalorder %s20, 3
      %p185 = por %p183, %p184
      %p186 = scmp.ne.s32.totalorder %s177, %s178
      %p187 = scmp.eq.s32.totalorder %s20, 0
      %p188 = por %p186, %p187
      %p189 = scmp.ne.s32.totalorder %s177, %s178
      %p190 = scmp.eq.s32.totalorder %s21, 3
      %p191 = por %p189, %p190
      %p193 = scmp.ne.s32.totalorder %s178, %s192
      %p194 = scmp.eq.s32.totalorder %s21, 0
      %p195 = por %p193, %p194
      %s196 = ssub.s32 %s15, %s22
      %p197 = scmp.eq.s32.totalorder %s196, 0
      %s199 = sadd.s32 %s198, 1
      %s200 = scalar_select %p197, %s198, %s199
      %p203 = pneg %p197
      %p204 = scmp.eq.s32.totalorder %s15, 3
      %p205 = por %p203, %p204
      %p206 = scmp.ne.s32.totalorder %s198, %s201
      %p207 = scmp.eq.s32.totalorder %s15, 0
      %p208 = por %p206, %p207
      %p209 = scmp.ne.s32.totalorder %s198, %s201
      %p210 = scmp.eq.s32.totalorder %s20, 3
      %p211 = por %p209, %p210
      %p212 = scmp.ne.s32.totalorder %s201, %s202
      %p213 = scmp.eq.s32.totalorder %s20, 0
      %p214 = por %p212, %p213
      %p215 = scmp.ne.s32.totalorder %s201, %s202
      %p216 = scmp.eq.s32.totalorder %s21, 3
      %p217 = por %p215, %p216
      %p219 = scmp.ne.s32.totalorder %s202, %s218
      %p220 = scmp.eq.s32.totalorder %s21, 0
      %p221 = por %p219, %p220
      %p222 = scmp.le.s32.totalorder 1, %s15
      %p223 = scmp.lt.s32.totalorder %s15, 5
      %p224 = pnand %p222, %p223
      %p225 = pneg %p224
      // Predicated region
      $region9: #{bnvae_forward.1} parent=5 // pred_check
        _
      $region10: #{bnvae_forward.1} parent=5 // pred_check_branch
        %227 = sbr.rel (%p224) target = $region12
      $region11: #{bnvae_forward.1} parent=5 // pred_region
        %s228 = ssub.s32 %s15, 1
        // Predicated region
        $region13: #{bnvae_forward.1} parent=11 // pred_check
          %p229 = pneg %p62
        $region14: #{bnvae_forward.1} parent=11 // pred_check_branch
          %231 = sbr.rel (%p229) target = $region16
        $region15: #{bnvae_forward.1} parent=11 // pred_region
          _
        $region16: #{bnvae_forward.1} parent=11 // pred_fallthru
          _
        // Predicated region
        $region17: #{bnvae_forward.1} parent=11 // pred_check
          %p232 = pneg %p83
        $region18: #{bnvae_forward.1} parent=11 // pred_check_branch
          %234 = sbr.rel (%p232) target = $region20
        $region19: #{bnvae_forward.1} parent=11 // pred_region
          %s236 = ssub.s32 16384, 16384
          %237 = vsyncadd [#allocation3], %s236
          %s238 = sshll.u32 [#allocation2], 4
          %s239 = int_to_ptr.vmem [resolvable:$true] %s238
          %244 = dma.hbm_to_vmem [thread:$0]  %s2, 16384, %s239, [#allocation3], 128, 128, 8
        $region20: #{bnvae_forward.1} parent=11 // pred_fallthru
          _
        // Predicated region
        $region21: #{bnvae_forward.1} parent=11 // pred_check
          %p245 = pneg %p104
        $region22: #{bnvae_forward.1} parent=11 // pred_check_branch
          %247 = sbr.rel (%p245) target = $region24
        $region23: #{bnvae_forward.1} parent=11 // pred_region
          _
        $region24: #{bnvae_forward.1} parent=11 // pred_fallthru
          _
        // Predicated region
        $region25: #{bnvae_forward.1} parent=11 // pred_check
          %p248 = pneg %p125
        $region26: #{bnvae_forward.1} parent=11 // pred_check_branch
          %250 = sbr.rel (%p248) target = $region28
        $region27: #{bnvae_forward.1} parent=11 // pred_region
          _
        $region28: #{bnvae_forward.1} parent=11 // pred_fallthru
          _
        // Predicated region
        $region29: #{bnvae_forward.1} parent=11 // pred_check
          %p251 = pneg %p146
        $region30: #{bnvae_forward.1} parent=11 // pred_check_branch
          %253 = sbr.rel (%p251) target = $region32
        $region31: #{bnvae_forward.1} parent=11 // pred_region
          _
        $region32: #{bnvae_forward.1} parent=11 // pred_fallthru
          _
        // Predicated region
        $region33: #{bnvae_forward.1} parent=11 // pred_check
          %p254 = pneg %p167
        $region34: #{bnvae_forward.1} parent=11 // pred_check_branch
          %256 = sbr.rel (%p254) target = $region36
        $region35: #{bnvae_forward.1} parent=11 // pred_region
          _
        $region36: #{bnvae_forward.1} parent=11 // pred_fallthru
          _
        // Predicated region
        $region37: #{bnvae_forward.1} parent=11 // pred_check
          %p257 = pneg %p188
        $region38: #{bnvae_forward.1} parent=11 // pred_check_branch
          %259 = sbr.rel (%p257) target = $region40
        $region39: #{bnvae_forward.1} parent=11 // pred_region
          _
        $region40: #{bnvae_forward.1} parent=11 // pred_fallthru
          _
      $region12: #{bnvae_forward.1} parent=5 // pred_fallthru
        _
      %p260 = scmp.lt.s32.totalorder %s15, 4
      // Predicated region
      $region41: #{bnvae_forward.1} parent=5 // pred_check
        %p261 = pneg %p260
      $region42: #{bnvae_forward.1} parent=5 // pred_check_branch
        %263 = sbr.rel (%p261) target = $region44
      $region43: #{bnvae_forward.1} parent=5 // pred_region
        // Predicated region
        $region45: #{bnvae_forward.1} parent=43 // pred_check
          %p264 = pneg %p35
        $region46: #{bnvae_forward.1} parent=43 // pred_check_branch
          %266 = sbr.rel (%p264) target = $region48
        $region47: #{bnvae_forward.1} parent=43 // pred_region
          %p267 = scmp.lt.s32.totalorder %s15, 3
          %s268 = scalar_select %p267, %s15, 3
          %s269 = smul.addr %s268, 8
          %s270 = scalar_lea.vmem %s0, %s269
        $region48: #{bnvae_forward.1} parent=43 // pred_fallthru
          _
      $region44: #{bnvae_forward.1} parent=5 // pred_fallthru
        _
      %p271 = scmp.le.s32.totalorder 1, %s15
      %p272 = scmp.lt.s32.totalorder %s15, 5
      %p273 = pnand %p271, %p272
      %p274 = pneg %p273
      // Predicated region
      $region49: #{bnvae_forward.1} parent=5 // pred_check
        _
      $region50: #{bnvae_forward.1} parent=5 // pred_check_branch
        %276 = sbr.rel (%p273) target = $region52
      $region51: #{bnvae_forward.1} parent=5 // pred_region
        %s277 = ssub.s32 %s15, 1
        // Predicated region
        $region53: #{bnvae_forward.1} parent=51 // pred_check
          %p278 = pneg %p83
        $region54: #{bnvae_forward.1} parent=51 // pred_check_branch
          %280 = sbr.rel (%p278) target = $region56
        $region55: #{bnvae_forward.1} parent=51 // pred_region
          %281 = dma.done [#allocation3], 16384
        $region56: #{bnvae_forward.1} parent=51 // pred_fallthru
          _
        %p282 = scmp.lt.s32.totalorder %s20, 3
        %s283 = scalar_select %p282, %s20, 3
        %s284 = smul.addr %s283, 8
        %s285 = scalar_lea.vmem %s0, %s284
        %p286 = pneg %p41
        %p287 = pneg %p38
        %p288 = pneg %p62
        %p289 = pneg %p59
        %p290 = pneg %p83
        %p291 = pneg %p80
        %p292 = pneg %p104
        %p293 = pneg %p101
        %p294 = pneg %p125
        %p295 = pneg %p122
        %p296 = pneg %p146
        %p297 = pneg %p143
        %p298 = pneg %p167
        %p299 = pneg %p164
        %p300 = pneg %p188
        %p301 = pneg %p185
        %p302 = pneg %p214
        %p303 = pneg %p211
        %p304 = scmp.lt.s32.totalorder %s20, 3
        %s305 = scalar_select %p304, %s20, 3
        %s306 = smul.addr %s305, 3
        %s307 = smul.addr %s306, 8
        %s308 = scalar_lea.vmem %s8, %s307
        %p309 = scmp.lt.s32.totalorder %s20, 3
        %s310 = scalar_select %p309, %s20, 3
        %s311 = smul.addr %s310, 8
        %s312 = scalar_lea.vmem %s0, %s311
        %p313 = scmp.lt.s32.totalorder %s20, 3
        %s314 = scalar_select %p313, %s20, 3
        %s315 = smul.addr %s314, 3
        %s316 = smul.addr %s315, 8
        %s317 = scalar_lea.vmem %s8, %s316
        %v319 = vld [vmem:[%s312] sm:$0xff]
        %v320 = vld [vmem:[%s4] sm:$0xff]
        %v321 = vld [vmem:[%s4 + $0x8] sm:$0xff]
        %v322 = vld [vmem:[%s4 + $0x10] sm:$0xff]
        %v323 = vld [vmem:[%s4 + $0x18] sm:$0xff]
        %v324 = vld [vmem:[%s4 + $0x20] sm:$0xff]
        %v325 = vld [vmem:[%s4 + $0x28] sm:$0xff]
        %v326 = vld [vmem:[%s4 + $0x30] sm:$0xff]
        %v327 = vld [vmem:[%s4 + $0x38] sm:$0xff]
        %v328 = vld [vmem:[%s4 + $0x40] sm:$0xff]
        %v329 = vld [vmem:[%s4 + $0x48] sm:$0xff]
        %v330 = vld [vmem:[%s4 + $0x50] sm:$0xff]
        %v331 = vld [vmem:[%s4 + $0x58] sm:$0xff]
        %v332 = vld [vmem:[%s4 + $0x60] sm:$0xff]
        %v333 = vld [vmem:[%s4 + $0x68] sm:$0xff]
        %v334 = vld [vmem:[%s4 + $0x70] sm:$0xff]
        %v335 = vld [vmem:[%s4 + $0x78] sm:$0xff]
        %v336 = vpack.c.bf16 %v319, %v319
        %v337 = vld [vmem:[%s7 + $0x6] sm:$0x3]
        %v339 = vlaneseq
        %v340 = vshrl.u32 %v339, 7
        %v341 = vsub.s32 0, %v340
        %v342 = vrot.slane %v337, %v341
        %v343 = vlaneseq
        %v344 = vshrl.u32 %v343, 7
        %v345 = vsub.s32 1, %v344
        %v346 = vrot.slane %v337, %v345
        %v365 = vunpack.c.l.b16 %v320
        %v366 = vunpack.c.h.b16 %v320
        %v367 = vunpack.c.l.b16 %v321
        %v368 = vunpack.c.h.b16 %v321
        %v369 = vunpack.c.l.b16 %v322
        %v370 = vunpack.c.h.b16 %v322
        %v371 = vunpack.c.l.b16 %v323
        %v372 = vunpack.c.h.b16 %v323
        %v373 = vunpack.c.l.b16 %v324
        %v374 = vunpack.c.h.b16 %v324
        %v375 = vunpack.c.l.b16 %v325
        %v376 = vunpack.c.h.b16 %v325
        %v377 = vunpack.c.l.b16 %v326
        %v378 = vunpack.c.h.b16 %v326
        %v379 = vunpack.c.l.b16 %v327
        %v380 = vunpack.c.h.b16 %v327
        %v381 = vunpack.c.l.b16 %v328
        %v382 = vunpack.c.h.b16 %v328
        %v383 = vunpack.c.l.b16 %v329
        %v384 = vunpack.c.h.b16 %v329
        %v385 = vunpack.c.l.b16 %v330
        %v386 = vunpack.c.h.b16 %v330
        %v387 = vunpack.c.l.b16 %v331
        %v388 = vunpack.c.h.b16 %v331
        %v389 = vunpack.c.l.b16 %v332
        %v390 = vunpack.c.h.b16 %v332
        %v391 = vunpack.c.l.b16 %v333
        %v392 = vunpack.c.h.b16 %v333
        %v393 = vunpack.c.l.b16 %v334
        %v394 = vunpack.c.h.b16 %v334
        %v395 = vunpack.c.l.b16 %v335
        %v396 = vunpack.c.h.b16 %v335
        %v397 = vpack.c.b16 %v367, %v365
        %v398 = vpack.c.b16 %v368, %v366
        %v399 = vpack.c.b16 %v371, %v369
        %v400 = vpack.c.b16 %v372, %v370
        %v401 = vpack.c.b16 %v375, %v373
        %v402 = vpack.c.b16 %v376, %v374
        %v403 = vpack.c.b16 %v379, %v377
        %v404 = vpack.c.b16 %v380, %v378
        %v405 = vpack.c.b16 %v383, %v381
        %v406 = vpack.c.b16 %v384, %v382
        %v407 = vpack.c.b16 %v387, %v385
        %v408 = vpack.c.b16 %v388, %v386
        %v409 = vpack.c.b16 %v391, %v389
        %v410 = vpack.c.b16 %v392, %v390
        %v411 = vpack.c.b16 %v395, %v393
        %v412 = vpack.c.b16 %v396, %v394
        %429 = vmatprep.subr.bf16.mxu0 %v398
        %430 = vmatpush1.bf16.msra.mxu0 %v397
        %431 = vmatprep.subr.bf16.mxu0 %v400
        %432 = vmatpush1.bf16.msra.mxu0 %v399
        %433 = vmatprep.subr.bf16.mxu0 %v402
        %434 = vmatpush1.bf16.msra.mxu0 %v401
        %435 = vmatprep.subr.bf16.mxu0 %v404
        %436 = vmatpush1.bf16.msra.mxu0 %v403
        %437 = vmatprep.subr.bf16.mxu0 %v406
        %438 = vmatpush1.bf16.msra.mxu0 %v405
        %439 = vmatprep.subr.bf16.mxu0 %v408
        %440 = vmatpush1.bf16.msra.mxu0 %v407
        %441 = vmatprep.subr.bf16.mxu0 %v410
        %442 = vmatpush1.bf16.msra.mxu0 %v409
        %443 = vmatprep.subr.bf16.mxu0 %v412
        %444 = vmatpush1.bf16.msra.mxu0 %v411
        %445 = vmatprep.subr.bf16.mxu0 0
        %446 = vmatpush1.bf16.msra.mxu0 0
        %447 = vmatprep.subr.bf16.mxu0 0
        %448 = vmatpush1.bf16.msra.mxu0 0
        %449 = vmatprep.subr.bf16.mxu0 0
        %450 = vmatpush1.bf16.msra.mxu0 0
        %451 = vmatprep.subr.bf16.mxu0 0
        %452 = vmatpush1.bf16.msra.mxu0 0
        %453 = vmatprep.subr.bf16.mxu0 0
        %454 = vmatpush1.bf16.msra.mxu0 0
        %455 = vmatprep.subr.bf16.mxu0 0
        %456 = vmatpush1.bf16.msra.mxu0 0
        %457 = vmatprep.subr.bf16.mxu0 0
        %458 = vmatpush1.bf16.msra.mxu0 0
        %459 = vmatprep.subr.bf16.mxu0 0
        %460 = vmatpush1.bf16.msra.mxu0 0
        %461 = vmatprep.mubr.bf16.mxu0 0
        %462 = vmatmul.mubr.bf16.gmra.mrb[0].mxu0 %v336
        %v463 = vpop.f32.mrb[0].mxu0
        %v464 = vadd.f32 %v342, %v463
        %v465 = vpop.f32.mrb[0].mxu0
        %v466 = vadd.f32 %v346, %v465
        %v467 = vpop.f32.mrb[0].mxu0
        %v468 = vpop.f32.mrb[0].mxu0
        %469 = vdwg.mxu0
        %v470 = vld [vmem:[%s1] sm:$0xff]
        %v471 = vld [vmem:[%s1 + $0x8] sm:$0xff]
        %v472 = vld [vmem:[%s1 + $0x10] sm:$0xff]
        %v473 = vld [vmem:[%s1 + $0x18] sm:$0xff]
        %v474 = vld [vmem:[%s1 + $0x20] sm:$0xff]
        %v475 = vld [vmem:[%s1 + $0x28] sm:$0xff]
        %v476 = vld [vmem:[%s1 + $0x30] sm:$0xff]
        %v477 = vld [vmem:[%s1 + $0x38] sm:$0xff]
        %v478 = vld [vmem:[%s1 + $0x40] sm:$0xff]
        %v479 = vld [vmem:[%s1 + $0x48] sm:$0xff]
        %v480 = vld [vmem:[%s1 + $0x50] sm:$0xff]
        %v481 = vld [vmem:[%s1 + $0x58] sm:$0xff]
        %v482 = vld [vmem:[%s1 + $0x60] sm:$0xff]
        %v483 = vld [vmem:[%s1 + $0x68] sm:$0xff]
        %v484 = vld [vmem:[%s1 + $0x70] sm:$0xff]
        %v485 = vld [vmem:[%s1 + $0x78] sm:$0xff]
        %v486 = vld [vmem:[%s7] sm:$0x3]
        %v488 = vlaneseq
        %v489 = vshrl.u32 %v488, 7
        %v490 = vsub.s32 0, %v489
        %v491 = vrot.slane %v486, %v490
        %v492 = vlaneseq
        %v493 = vshrl.u32 %v492, 7
        %v494 = vsub.s32 1, %v493
        %v495 = vrot.slane %v486, %v494
        %v514 = vunpack.c.l.b16 %v470
        %v515 = vunpack.c.h.b16 %v470
        %v516 = vunpack.c.l.b16 %v471
        %v517 = vunpack.c.h.b16 %v471
        %v518 = vunpack.c.l.b16 %v472
        %v519 = vunpack.c.h.b16 %v472
        %v520 = vunpack.c.l.b16 %v473
        %v521 = vunpack.c.h.b16 %v473
        %v522 = vunpack.c.l.b16 %v474
        %v523 = vunpack.c.h.b16 %v474
        %v524 = vunpack.c.l.b16 %v475
        %v525 = vunpack.c.h.b16 %v475
        %v526 = vunpack.c.l.b16 %v476
        %v527 = vunpack.c.h.b16 %v476
        %v528 = vunpack.c.l.b16 %v477
        %v529 = vunpack.c.h.b16 %v477
        %v530 = vunpack.c.l.b16 %v478
        %v531 = vunpack.c.h.b16 %v478
        %v532 = vunpack.c.l.b16 %v479
        %v533 = vunpack.c.h.b16 %v479
        %v534 = vunpack.c.l.b16 %v480
        %v535 = vunpack.c.h.b16 %v480
        %v536 = vunpack.c.l.b16 %v481
        %v537 = vunpack.c.h.b16 %v481
        %v538 = vunpack.c.l.b16 %v482
        %v539 = vunpack.c.h.b16 %v482
        %v540 = vunpack.c.l.b16 %v483
        %v541 = vunpack.c.h.b16 %v483
        %v542 = vunpack.c.l.b16 %v484
        %v543 = vunpack.c.h.b16 %v484
        %v544 = vunpack.c.l.b16 %v485
        %v545 = vunpack.c.h.b16 %v485
        %v546 = vpack.c.b16 %v516, %v514
        %v547 = vpack.c.b16 %v517, %v515
        %v548 = vpack.c.b16 %v520, %v518
        %v549 = vpack.c.b16 %v521, %v519
        %v550 = vpack.c.b16 %v524, %v522
        %v551 = vpack.c.b16 %v525, %v523
        %v552 = vpack.c.b16 %v528, %v526
        %v553 = vpack.c.b16 %v529, %v527
        %v554 = vpack.c.b16 %v532, %v530
        %v555 = vpack.c.b16 %v533, %v531
        %v556 = vpack.c.b16 %v536, %v534
        %v557 = vpack.c.b16 %v537, %v535
        %v558 = vpack.c.b16 %v540, %v538
        %v559 = vpack.c.b16 %v541, %v539
        %v560 = vpack.c.b16 %v544, %v542
        %v561 = vpack.c.b16 %v545, %v543
        %578 = vmatprep.subr.bf16.mxu0 %v547
        %579 = vmatpush1.bf16.msra.mxu0 %v546
        %580 = vmatprep.subr.bf16.mxu0 %v549
        %581 = vmatpush1.bf16.msra.mxu0 %v548
        %582 = vmatprep.subr.bf16.mxu0 %v551
        %583 = vmatpush1.bf16.msra.mxu0 %v550
        %584 = vmatprep.subr.bf16.mxu0 %v553
        %585 = vmatpush1.bf16.msra.mxu0 %v552
        %586 = vmatprep.subr.bf16.mxu0 %v555
        %587 = vmatpush1.bf16.msra.mxu0 %v554
        %588 = vmatprep.subr.bf16.mxu0 %v557
        %589 = vmatpush1.bf16.msra.mxu0 %v556
        %590 = vmatprep.subr.bf16.mxu0 %v559
        %591 = vmatpush1.bf16.msra.mxu0 %v558
        %592 = vmatprep.subr.bf16.mxu0 %v561
        %593 = vmatpush1.bf16.msra.mxu0 %v560
        %594 = vmatprep.subr.bf16.mxu0 0
        %595 = vmatpush1.bf16.msra.mxu0 0
        %596 = vmatprep.subr.bf16.mxu0 0
        %597 = vmatpush1.bf16.msra.mxu0 0
        %598 = vmatprep.subr.bf16.mxu0 0
        %599 = vmatpush1.bf16.msra.mxu0 0
        %600 = vmatprep.subr.bf16.mxu0 0
        %601 = vmatpush1.bf16.msra.mxu0 0
        %602 = vmatprep.subr.bf16.mxu0 0
        %603 = vmatpush1.bf16.msra.mxu0 0
        %604 = vmatprep.subr.bf16.mxu0 0
        %605 = vmatpush1.bf16.msra.mxu0 0
        %606 = vmatprep.subr.bf16.mxu0 0
        %607 = vmatpush1.bf16.msra.mxu0 0
        %608 = vmatprep.subr.bf16.mxu0 0
        %609 = vmatpush1.bf16.msra.mxu0 0
        %610 = vmatprep.mubr.bf16.mxu0 0
        %611 = vmatmul.mubr.bf16.gmra.mrb[0].mxu0 %v336
        %v612 = vpop.f32.mrb[0].mxu0
        %v613 = vadd.f32 %v491, %v612
        %v614 = vpop.f32.mrb[0].mxu0
        %v615 = vadd.f32 %v495, %v614
        %v616 = vpop.f32.mrb[0].mxu0
        %v617 = vpop.f32.mrb[0].mxu0
        %618 = vdwg.mxu0
        %v619 = vmax.f32 %v613, 0.0
        %v620 = vmax.f32 %v615, 0.0
        %v621 = vld [vmem:[#allocation2] sm:$0xff]
        %v622 = vld [vmem:[#allocation2 + $0x8] sm:$0xff]
        %v623 = vld [vmem:[#allocation2 + $0x10] sm:$0xff]
        %v624 = vld [vmem:[#allocation2 + $0x18] sm:$0xff]
        %v625 = vld [vmem:[#allocation2 + $0x20] sm:$0xff]
        %v626 = vld [vmem:[#allocation2 + $0x28] sm:$0xff]
        %v627 = vld [vmem:[#allocation2 + $0x30] sm:$0xff]
        %v628 = vld [vmem:[#allocation2 + $0x38] sm:$0xff]
        %v629 = vld [vmem:[#allocation2 + $0x40] sm:$0xff]
        %v630 = vld [vmem:[#allocation2 + $0x48] sm:$0xff]
        %v631 = vld [vmem:[#allocation2 + $0x50] sm:$0xff]
        %v632 = vld [vmem:[#allocation2 + $0x58] sm:$0xff]
        %v633 = vld [vmem:[#allocation2 + $0x60] sm:$0xff]
        %v634 = vld [vmem:[#allocation2 + $0x68] sm:$0xff]
        %v635 = vld [vmem:[#allocation2 + $0x70] sm:$0xff]
        %v636 = vld [vmem:[#allocation2 + $0x78] sm:$0xff]
        %v637 = vld [vmem:[#allocation2 + $0x80] sm:$0xff]
        %v638 = vld [vmem:[#allocation2 + $0x88] sm:$0xff]
        %v639 = vld [vmem:[#allocation2 + $0x90] sm:$0xff]
        %v640 = vld [vmem:[#allocation2 + $0x98] sm:$0xff]
        %v641 = vld [vmem:[#allocation2 + $0xa0] sm:$0xff]
        %v642 = vld [vmem:[#allocation2 + $0xa8] sm:$0xff]
        %v643 = vld [vmem:[#allocation2 + $0xb0] sm:$0xff]
        %v644 = vld [vmem:[#allocation2 + $0xb8] sm:$0xff]
        %v645 = vld [vmem:[#allocation2 + $0xc0] sm:$0xff]
        %v646 = vld [vmem:[#allocation2 + $0xc8] sm:$0xff]
        %v647 = vld [vmem:[#allocation2 + $0xd0] sm:$0xff]
        %v648 = vld [vmem:[#allocation2 + $0xd8] sm:$0xff]
        %v649 = vld [vmem:[#allocation2 + $0xe0] sm:$0xff]
        %v650 = vld [vmem:[#allocation2 + $0xe8] sm:$0xff]
        %v651 = vld [vmem:[#allocation2 + $0xf0] sm:$0xff]
        %v652 = vld [vmem:[#allocation2 + $0xf8] sm:$0xff]
        %v653 = vpack.c.bf16 %v619, %v619
        %v654 = vpack.c.bf16 %v620, %v620
        %v655 = vld [vmem:[%s7 + $0x2] sm:$0x3]
        %v657 = vlaneseq
        %v658 = vshrl.u32 %v657, 7
        %v659 = vsub.s32 0, %v658
        %v660 = vrot.slane %v655, %v659
        %v661 = vlaneseq
        %v662 = vshrl.u32 %v661, 7
        %v663 = vsub.s32 1, %v662
        %v664 = vrot.slane %v655, %v663
        %v699 = vunpack.c.l.b16 %v621
        %v700 = vunpack.c.h.b16 %v621
        %v701 = vunpack.c.l.b16 %v622
        %v702 = vunpack.c.h.b16 %v622
        %v703 = vunpack.c.l.b16 %v623
        %v704 = vunpack.c.h.b16 %v623
        %v705 = vunpack.c.l.b16 %v624
        %v706 = vunpack.c.h.b16 %v624
        %v707 = vunpack.c.l.b16 %v625
        %v708 = vunpack.c.h.b16 %v625
        %v709 = vunpack.c.l.b16 %v626
        %v710 = vunpack.c.h.b16 %v626
        %v711 = vunpack.c.l.b16 %v627
        %v712 = vunpack.c.h.b16 %v627
        %v713 = vunpack.c.l.b16 %v628
        %v714 = vunpack.c.h.b16 %v628
        %v715 = vunpack.c.l.b16 %v629
        %v716 = vunpack.c.h.b16 %v629
        %v717 = vunpack.c.l.b16 %v630
        %v718 = vunpack.c.h.b16 %v630
        %v719 = vunpack.c.l.b16 %v631
        %v720 = vunpack.c.h.b16 %v631
        %v721 = vunpack.c.l.b16 %v632
        %v722 = vunpack.c.h.b16 %v632
        %v723 = vunpack.c.l.b16 %v633
        %v724 = vunpack.c.h.b16 %v633
        %v725 = vunpack.c.l.b16 %v634
        %v726 = vunpack.c.h.b16 %v634
        %v727 = vunpack.c.l.b16 %v635
        %v728 = vunpack.c.h.b16 %v635
        %v729 = vunpack.c.l.b16 %v636
        %v730 = vunpack.c.h.b16 %v636
        %v731 = vunpack.c.l.b16 %v637
        %v732 = vunpack.c.h.b16 %v637
        %v733 = vunpack.c.l.b16 %v638
        %v734 = vunpack.c.h.b16 %v638
        %v735 = vunpack.c.l.b16 %v639
        %v736 = vunpack.c.h.b16 %v639
        %v737 = vunpack.c.l.b16 %v640
        %v738 = vunpack.c.h.b16 %v640
        %v739 = vunpack.c.l.b16 %v641
        %v740 = vunpack.c.h.b16 %v641
        %v741 = vunpack.c.l.b16 %v642
        %v742 = vunpack.c.h.b16 %v642
        %v743 = vunpack.c.l.b16 %v643
        %v744 = vunpack.c.h.b16 %v643
        %v745 = vunpack.c.l.b16 %v644
        %v746 = vunpack.c.h.b16 %v644
        %v747 = vunpack.c.l.b16 %v645
        %v748 = vunpack.c.h.b16 %v645
        %v749 = vunpack.c.l.b16 %v646
        %v750 = vunpack.c.h.b16 %v646
        %v751 = vunpack.c.l.b16 %v647
        %v752 = vunpack.c.h.b16 %v647
        %v753 = vunpack.c.l.b16 %v648
        %v754 = vunpack.c.h.b16 %v648
        %v755 = vunpack.c.l.b16 %v649
        %v756 = vunpack.c.h.b16 %v649
        %v757 = vunpack.c.l.b16 %v650
        %v758 = vunpack.c.h.b16 %v650
        %v759 = vunpack.c.l.b16 %v651
        %v760 = vunpack.c.h.b16 %v651
        %v761 = vunpack.c.l.b16 %v652
        %v762 = vunpack.c.h.b16 %v652
        %v763 = vpack.c.b16 %v701, %v699
        %v764 = vpack.c.b16 %v702, %v700
        %v765 = vpack.c.b16 %v705, %v703
        %v766 = vpack.c.b16 %v706, %v704
        %v767 = vpack.c.b16 %v709, %v707
        %v768 = vpack.c.b16 %v710, %v708
        %v769 = vpack.c.b16 %v713, %v711
        %v770 = vpack.c.b16 %v714, %v712
        %v771 = vpack.c.b16 %v717, %v715
        %v772 = vpack.c.b16 %v718, %v716
        %v773 = vpack.c.b16 %v721, %v719
        %v774 = vpack.c.b16 %v722, %v720
        %v775 = vpack.c.b16 %v725, %v723
        %v776 = vpack.c.b16 %v726, %v724
        %v777 = vpack.c.b16 %v729, %v727
        %v778 = vpack.c.b16 %v730, %v728
        %v779 = vpack.c.b16 %v733, %v731
        %v780 = vpack.c.b16 %v734, %v732
        %v781 = vpack.c.b16 %v737, %v735
        %v782 = vpack.c.b16 %v738, %v736
        %v783 = vpack.c.b16 %v741, %v739
        %v784 = vpack.c.b16 %v742, %v740
        %v785 = vpack.c.b16 %v745, %v743
        %v786 = vpack.c.b16 %v746, %v744
        %v787 = vpack.c.b16 %v749, %v747
        %v788 = vpack.c.b16 %v750, %v748
        %v789 = vpack.c.b16 %v753, %v751
        %v790 = vpack.c.b16 %v754, %v752
        %v791 = vpack.c.b16 %v757, %v755
        %v792 = vpack.c.b16 %v758, %v756
        %v793 = vpack.c.b16 %v761, %v759
        %v794 = vpack.c.b16 %v762, %v760
        %827 = vmatprep.subr.bf16.mxu0 %v764
        %828 = vmatpush1.bf16.msra.mxu0 %v763
        %829 = vmatprep.subr.bf16.mxu0 %v766
        %830 = vmatpush1.bf16.msra.mxu0 %v765
        %831 = vmatprep.subr.bf16.mxu0 %v768
        %832 = vmatpush1.bf16.msra.mxu0 %v767
        %833 = vmatprep.subr.bf16.mxu0 %v770
        %834 = vmatpush1.bf16.msra.mxu0 %v769
        %835 = vmatprep.subr.bf16.mxu0 %v772
        %836 = vmatpush1.bf16.msra.mxu0 %v771
        %837 = vmatprep.subr.bf16.mxu0 %v774
        %838 = vmatpush1.bf16.msra.mxu0 %v773
        %839 = vmatprep.subr.bf16.mxu0 %v776
        %840 = vmatpush1.bf16.msra.mxu0 %v775
        %841 = vmatprep.subr.bf16.mxu0 %v778
        %842 = vmatpush1.bf16.msra.mxu0 %v777
        %843 = vmatprep.subr.bf16.mxu0 %v780
        %844 = vmatpush1.bf16.msra.mxu0 %v779
        %845 = vmatprep.subr.bf16.mxu0 %v782
        %846 = vmatpush1.bf16.msra.mxu0 %v781
        %847 = vmatprep.subr.bf16.mxu0 %v784
        %848 = vmatpush1.bf16.msra.mxu0 %v783
        %849 = vmatprep.subr.bf16.mxu0 %v786
        %850 = vmatpush1.bf16.msra.mxu0 %v785
        %851 = vmatprep.subr.bf16.mxu0 %v788
        %852 = vmatpush1.bf16.msra.mxu0 %v787
        %853 = vmatprep.subr.bf16.mxu0 %v790
        %854 = vmatpush1.bf16.msra.mxu0 %v789
        %855 = vmatprep.subr.bf16.mxu0 %v792
        %856 = vmatpush1.bf16.msra.mxu0 %v791
        %857 = vmatprep.subr.bf16.mxu0 %v794
        %858 = vmatpush1.bf16.msra.mxu0 %v793
        %859 = vmatprep.mubr.bf16.mxu0 %v654
        %860 = vmatmul.mubr.bf16.gmra.mrb[0].mxu0 %v653
        %v861 = vpop.f32.mrb[0].mxu0
        %v862 = vadd.f32 %v660, %v861
        %v863 = vpop.f32.mrb[0].mxu0
        %v864 = vadd.f32 %v664, %v863
        %v865 = vpop.f32.mrb[0].mxu0
        %v866 = vpop.f32.mrb[0].mxu0
        %867 = vdwg.mxu0
        %v868 = vmax.f32 %v862, 0.0
        %v869 = vmax.f32 %v864, 0.0
        %s870 = scalar_lea.vmem [#allocation2], 256
        %v871 = vld [vmem:[%s870] sm:$0xff]
        %v872 = vld [vmem:[%s870 + $0x8] sm:$0xff]
        %v873 = vld [vmem:[%s870 + $0x10] sm:$0xff]
        %v874 = vld [vmem:[%s870 + $0x18] sm:$0xff]
        %v875 = vld [vmem:[%s870 + $0x20] sm:$0xff]
        %v876 = vld [vmem:[%s870 + $0x28] sm:$0xff]
        %v877 = vld [vmem:[%s870 + $0x30] sm:$0xff]
        %v878 = vld [vmem:[%s870 + $0x38] sm:$0xff]
        %v879 = vld [vmem:[%s870 + $0x40] sm:$0xff]
        %v880 = vld [vmem:[%s870 + $0x48] sm:$0xff]
        %v881 = vld [vmem:[%s870 + $0x50] sm:$0xff]
        %v882 = vld [vmem:[%s870 + $0x58] sm:$0xff]
        %v883 = vld [vmem:[%s870 + $0x60] sm:$0xff]
        %v884 = vld [vmem:[%s870 + $0x68] sm:$0xff]
        %v885 = vld [vmem:[%s870 + $0x70] sm:$0xff]
        %v886 = vld [vmem:[%s870 + $0x78] sm:$0xff]
        %v887 = vld [vmem:[%s870 + $0x80] sm:$0xff]
        %v888 = vld [vmem:[%s870 + $0x88] sm:$0xff]
        %v889 = vld [vmem:[%s870 + $0x90] sm:$0xff]
        %v890 = vld [vmem:[%s870 + $0x98] sm:$0xff]
        %v891 = vld [vmem:[%s870 + $0xa0] sm:$0xff]
        %v892 = vld [vmem:[%s870 + $0xa8] sm:$0xff]
        %v893 = vld [vmem:[%s870 + $0xb0] sm:$0xff]
        %v894 = vld [vmem:[%s870 + $0xb8] sm:$0xff]
        %v895 = vld [vmem:[%s870 + $0xc0] sm:$0xff]
        %v896 = vld [vmem:[%s870 + $0xc8] sm:$0xff]
        %v897 = vld [vmem:[%s870 + $0xd0] sm:$0xff]
        %v898 = vld [vmem:[%s870 + $0xd8] sm:$0xff]
        %v899 = vld [vmem:[%s870 + $0xe0] sm:$0xff]
        %v900 = vld [vmem:[%s870 + $0xe8] sm:$0xff]
        %v901 = vld [vmem:[%s870 + $0xf0] sm:$0xff]
        %v902 = vld [vmem:[%s870 + $0xf8] sm:$0xff]
        %v903 = vpack.c.bf16 %v868, %v868
        %v904 = vpack.c.bf16 %v869, %v869
        %v905 = vld [vmem:[%s7 + $0x4] sm:$0x3]
        %v907 = vlaneseq
        %v908 = vshrl.u32 %v907, 7
        %v909 = vsub.s32 0, %v908
        %v910 = vrot.slane %v905, %v909
        %v911 = vlaneseq
        %v912 = vshrl.u32 %v911, 7
        %v913 = vsub.s32 1, %v912
        %v914 = vrot.slane %v905, %v913
        %v949 = vunpack.c.l.b16 %v871
        %v950 = vunpack.c.h.b16 %v871
        %v951 = vunpack.c.l.b16 %v872
        %v952 = vunpack.c.h.b16 %v872
        %v953 = vunpack.c.l.b16 %v873
        %v954 = vunpack.c.h.b16 %v873
        %v955 = vunpack.c.l.b16 %v874
        %v956 = vunpack.c.h.b16 %v874
        %v957 = vunpack.c.l.b16 %v875
        %v958 = vunpack.c.h.b16 %v875
        %v959 = vunpack.c.l.b16 %v876
        %v960 = vunpack.c.h.b16 %v876
        %v961 = vunpack.c.l.b16 %v877
        %v962 = vunpack.c.h.b16 %v877
        %v963 = vunpack.c.l.b16 %v878
        %v964 = vunpack.c.h.b16 %v878
        %v965 = vunpack.c.l.b16 %v879
        %v966 = vunpack.c.h.b16 %v879
        %v967 = vunpack.c.l.b16 %v880
        %v968 = vunpack.c.h.b16 %v880
        %v969 = vunpack.c.l.b16 %v881
        %v970 = vunpack.c.h.b16 %v881
        %v971 = vunpack.c.l.b16 %v882
        %v972 = vunpack.c.h.b16 %v882
        %v973 = vunpack.c.l.b16 %v883
        %v974 = vunpack.c.h.b16 %v883
        %v975 = vunpack.c.l.b16 %v884
        %v976 = vunpack.c.h.b16 %v884
        %v977 = vunpack.c.l.b16 %v885
        %v978 = vunpack.c.h.b16 %v885
        %v979 = vunpack.c.l.b16 %v886
        %v980 = vunpack.c.h.b16 %v886
        %v981 = vunpack.c.l.b16 %v887
        %v982 = vunpack.c.h.b16 %v887
        %v983 = vunpack.c.l.b16 %v888
        %v984 = vunpack.c.h.b16 %v888
        %v985 = vunpack.c.l.b16 %v889
        %v986 = vunpack.c.h.b16 %v889
        %v987 = vunpack.c.l.b16 %v890
        %v988 = vunpack.c.h.b16 %v890
        %v989 = vunpack.c.l.b16 %v891
        %v990 = vunpack.c.h.b16 %v891
        %v991 = vunpack.c.l.b16 %v892
        %v992 = vunpack.c.h.b16 %v892
        %v993 = vunpack.c.l.b16 %v893
        %v994 = vunpack.c.h.b16 %v893
        %v995 = vunpack.c.l.b16 %v894
        %v996 = vunpack.c.h.b16 %v894
        %v997 = vunpack.c.l.b16 %v895
        %v998 = vunpack.c.h.b16 %v895
        %v999 = vunpack.c.l.b16 %v896
        %v1000 = vunpack.c.h.b16 %v896
        %v1001 = vunpack.c.l.b16 %v897
        %v1002 = vunpack.c.h.b16 %v897
        %v1003 = vunpack.c.l.b16 %v898
        %v1004 = vunpack.c.h.b16 %v898
        %v1005 = vunpack.c.l.b16 %v899
        %v1006 = vunpack.c.h.b16 %v899
        %v1007 = vunpack.c.l.b16 %v900
        %v1008 = vunpack.c.h.b16 %v900
        %v1009 = vunpack.c.l.b16 %v901
        %v1010 = vunpack.c.h.b16 %v901
        %v1011 = vunpack.c.l.b16 %v902
        %v1012 = vunpack.c.h.b16 %v902
        %v1013 = vpack.c.b16 %v951, %v949
        %v1014 = vpack.c.b16 %v952, %v950
        %v1015 = vpack.c.b16 %v955, %v953
        %v1016 = vpack.c.b16 %v956, %v954
        %v1017 = vpack.c.b16 %v959, %v957
        %v1018 = vpack.c.b16 %v960, %v958
        %v1019 = vpack.c.b16 %v963, %v961
        %v1020 = vpack.c.b16 %v964, %v962
        %v1021 = vpack.c.b16 %v967, %v965
        %v1022 = vpack.c.b16 %v968, %v966
        %v1023 = vpack.c.b16 %v971, %v969
        %v1024 = vpack.c.b16 %v972, %v970
        %v1025 = vpack.c.b16 %v975, %v973
        %v1026 = vpack.c.b16 %v976, %v974
        %v1027 = vpack.c.b16 %v979, %v977
        %v1028 = vpack.c.b16 %v980, %v978
        %v1029 = vpack.c.b16 %v983, %v981
        %v1030 = vpack.c.b16 %v984, %v982
        %v1031 = vpack.c.b16 %v987, %v985
        %v1032 = vpack.c.b16 %v988, %v986
        %v1033 = vpack.c.b16 %v991, %v989
        %v1034 = vpack.c.b16 %v992, %v990
        %v1035 = vpack.c.b16 %v995, %v993
        %v1036 = vpack.c.b16 %v996, %v994
        %v1037 = vpack.c.b16 %v999, %v997
        %v1038 = vpack.c.b16 %v1000, %v998
        %v1039 = vpack.c.b16 %v1003, %v1001
        %v1040 = vpack.c.b16 %v1004, %v1002
        %v1041 = vpack.c.b16 %v1007, %v1005
        %v1042 = vpack.c.b16 %v1008, %v1006
        %v1043 = vpack.c.b16 %v1011, %v1009
        %v1044 = vpack.c.b16 %v1012, %v1010
        %1077 = vmatprep.subr.bf16.mxu0 %v1014
        %1078 = vmatpush1.bf16.msra.mxu0 %v1013
        %1079 = vmatprep.subr.bf16.mxu0 %v1016
        %1080 = vmatpush1.bf16.msra.mxu0 %v1015
        %1081 = vmatprep.subr.bf16.mxu0 %v1018
        %1082 = vmatpush1.bf16.msra.mxu0 %v1017
        %1083 = vmatprep.subr.bf16.mxu0 %v1020
        %1084 = vmatpush1.bf16.msra.mxu0 %v1019
        %1085 = vmatprep.subr.bf16.mxu0 %v1022
        %1086 = vmatpush1.bf16.msra.mxu0 %v1021
        %1087 = vmatprep.subr.bf16.mxu0 %v1024
        %1088 = vmatpush1.bf16.msra.mxu0 %v1023
        %1089 = vmatprep.subr.bf16.mxu0 %v1026
        %1090 = vmatpush1.bf16.msra.mxu0 %v1025
        %1091 = vmatprep.subr.bf16.mxu0 %v1028
        %1092 = vmatpush1.bf16.msra.mxu0 %v1027
        %1093 = vmatprep.subr.bf16.mxu0 %v1030
        %1094 = vmatpush1.bf16.msra.mxu0 %v1029
        %1095 = vmatprep.subr.bf16.mxu0 %v1032
        %1096 = vmatpush1.bf16.msra.mxu0 %v1031
        %1097 = vmatprep.subr.bf16.mxu0 %v1034
        %1098 = vmatpush1.bf16.msra.mxu0 %v1033
        %1099 = vmatprep.subr.bf16.mxu0 %v1036
        %1100 = vmatpush1.bf16.msra.mxu0 %v1035
        %1101 = vmatprep.subr.bf16.mxu0 %v1038
        %1102 = vmatpush1.bf16.msra.mxu0 %v1037
        %1103 = vmatprep.subr.bf16.mxu0 %v1040
        %1104 = vmatpush1.bf16.msra.mxu0 %v1039
        %1105 = vmatprep.subr.bf16.mxu0 %v1042
        %1106 = vmatpush1.bf16.msra.mxu0 %v1041
        %1107 = vmatprep.subr.bf16.mxu0 %v1044
        %1108 = vmatpush1.bf16.msra.mxu0 %v1043
        %1109 = vmatprep.mubr.bf16.mxu0 %v904
        %1110 = vmatmul.mubr.bf16.gmra.mrb[0].mxu0 %v903
        %v1111 = vpop.f32.mrb[0].mxu0
        %v1112 = vadd.f32 %v910, %v1111
        %v1113 = vpop.f32.mrb[0].mxu0
        %v1114 = vadd.f32 %v914, %v1113
        %v1115 = vpop.f32.mrb[0].mxu0
        %v1116 = vpop.f32.mrb[0].mxu0
        %1117 = vdwg.mxu0
        %v1118 = vmax.f32 %v1112, 0.0
        %v1119 = vmax.f32 %v1114, 0.0
        %v1120 = vld [vmem:[%s3] sm:$0xff]
        %v1121 = vld [vmem:[%s3 + $0x8] sm:$0xff]
        %v1122 = vld [vmem:[%s3 + $0x10] sm:$0xff]
        %v1123 = vld [vmem:[%s3 + $0x18] sm:$0xff]
        %v1124 = vld [vmem:[%s3 + $0x20] sm:$0xff]
        %v1125 = vld [vmem:[%s3 + $0x28] sm:$0xff]
        %v1126 = vld [vmem:[%s3 + $0x30] sm:$0xff]
        %v1127 = vld [vmem:[%s3 + $0x38] sm:$0xff]
        %v1128 = vld [vmem:[%s3 + $0x40] sm:$0xff]
        %v1129 = vld [vmem:[%s3 + $0x48] sm:$0xff]
        %v1130 = vld [vmem:[%s3 + $0x50] sm:$0xff]
        %v1131 = vld [vmem:[%s3 + $0x58] sm:$0xff]
        %v1132 = vld [vmem:[%s3 + $0x60] sm:$0xff]
        %v1133 = vld [vmem:[%s3 + $0x68] sm:$0xff]
        %v1134 = vld [vmem:[%s3 + $0x70] sm:$0xff]
        %v1135 = vld [vmem:[%s3 + $0x78] sm:$0xff]
        %v1136 = vld [vmem:[%s3 + $0x80] sm:$0xff]
        %v1137 = vld [vmem:[%s3 + $0x88] sm:$0xff]
        %v1138 = vld [vmem:[%s3 + $0x90] sm:$0xff]
        %v1139 = vld [vmem:[%s3 + $0x98] sm:$0xff]
        %v1140 = vld [vmem:[%s3 + $0xa0] sm:$0xff]
        %v1141 = vld [vmem:[%s3 + $0xa8] sm:$0xff]
        %v1142 = vld [vmem:[%s3 + $0xb0] sm:$0xff]
        %v1143 = vld [vmem:[%s3 + $0xb8] sm:$0xff]
        %v1144 = vld [vmem:[%s3 + $0xc0] sm:$0xff]
        %v1145 = vld [vmem:[%s3 + $0xc8] sm:$0xff]
        %v1146 = vld [vmem:[%s3 + $0xd0] sm:$0xff]
        %v1147 = vld [vmem:[%s3 + $0xd8] sm:$0xff]
        %v1148 = vld [vmem:[%s3 + $0xe0] sm:$0xff]
        %v1149 = vld [vmem:[%s3 + $0xe8] sm:$0xff]
        %v1150 = vld [vmem:[%s3 + $0xf0] sm:$0xff]
        %v1151 = vld [vmem:[%s3 + $0xf8] sm:$0xff]
        %v1152 = vld [vmem:[%s7 + $0xc] sm:$0x1]
        %v1154 = vlaneseq
        %v1155 = vshrl.u32 %v1154, 7
        %v1156 = vsub.s32 0, %v1155
        %v1157 = vrot.slane %v1152, %v1156
        %1159 = vmatprep.subr.mxu0 0.0
        %1160 = vmatpush1.msra.mxu0 %v1120
        %1161 = vmatprep.subr.mxu0 0.0
        %1162 = vmatpush1.msra.mxu0 %v1121
        %1163 = vmatprep.subr.mxu0 0.0
        %1164 = vmatpush1.msra.mxu0 %v1122
        %1165 = vmatprep.subr.mxu0 0.0
        %1166 = vmatpush1.msra.mxu0 %v1123
        %1167 = vmatprep.subr.mxu0 0.0
        %1168 = vmatpush1.msra.mxu0 %v1124
        %1169 = vmatprep.subr.mxu0 0.0
        %1170 = vmatpush1.msra.mxu0 %v1125
        %1171 = vmatprep.subr.mxu0 0.0
        %1172 = vmatpush1.msra.mxu0 %v1126
        %1173 = vmatprep.subr.mxu0 0.0
        %1174 = vmatpush1.msra.mxu0 %v1127
        %1175 = vmatprep.subr.mxu0 0.0
        %1176 = vmatpush1.msra.mxu0 %v1128
        %1177 = vmatprep.subr.mxu0 0.0
        %1178 = vmatpush1.msra.mxu0 %v1129
        %1179 = vmatprep.subr.mxu0 0.0
        %1180 = vmatpush1.msra.mxu0 %v1130
        %1181 = vmatprep.subr.mxu0 0.0
        %1182 = vmatpush1.msra.mxu0 %v1131
        %1183 = vmatprep.subr.mxu0 0.0
        %1184 = vmatpush1.msra.mxu0 %v1132
        %1185 = vmatprep.subr.mxu0 0.0
        %1186 = vmatpush1.msra.mxu0 %v1133
        %1187 = vmatprep.subr.mxu0 0.0
        %1188 = vmatpush1.msra.mxu0 %v1134
        %1189 = vmatprep.subr.mxu0 0.0
        %1190 = vmatpush1.msra.mxu0 %v1135
        %1191 = vmatprep.subr.mxu0 0.0
        %1192 = vmatpush1.msra.mxu0 %v1136
        %1193 = vmatprep.subr.mxu0 0.0
        %1194 = vmatpush1.msra.mxu0 %v1137
        %1195 = vmatprep.subr.mxu0 0.0
        %1196 = vmatpush1.msra.mxu0 %v1138
        %1197 = vmatprep.subr.mxu0 0.0
        %1198 = vmatpush1.msra.mxu0 %v1139
        %1199 = vmatprep.subr.mxu0 0.0
        %1200 = vmatpush1.msra.mxu0 %v1140
        %1201 = vmatprep.subr.mxu0 0.0
        %1202 = vmatpush1.msra.mxu0 %v1141
        %1203 = vmatprep.subr.mxu0 0.0
        %1204 = vmatpush1.msra.mxu0 %v1142
        %1205 = vmatprep.subr.mxu0 0.0
        %1206 = vmatpush1.msra.mxu0 %v1143
        %1207 = vmatprep.subr.mxu0 0.0
        %1208 = vmatpush1.msra.mxu0 %v1144
        %1209 = vmatprep.subr.mxu0 0.0
        %1210 = vmatpush1.msra.mxu0 %v1145
        %1211 = vmatprep.subr.mxu0 0.0
        %1212 = vmatpush1.msra.mxu0 %v1146
        %1213 = vmatprep.subr.mxu0 0.0
        %1214 = vmatpush1.msra.mxu0 %v1147
        %1215 = vmatprep.subr.mxu0 0.0
        %1216 = vmatpush1.msra.mxu0 %v1148
        %1217 = vmatprep.subr.mxu0 0.0
        %1218 = vmatpush1.msra.mxu0 %v1149
        %1219 = vmatprep.subr.mxu0 0.0
        %1220 = vmatpush1.msra.mxu0 %v1150
        %1221 = vmatprep.subr.mxu0 0.0
        %1222 = vmatpush1.msra.mxu0 %v1151
        %1223 = vmatprep.mubr.f32.mxu0 %v1119
        %1224 = vmatmul.mubr.f32.gmra.mrb[0].mxu0 %v1118
        %v1225 = vpop.f32.mrb[0].mxu0
        %v1226 = vadd.f32 %v1157, %v1225
        %v1227 = vpop.f32.mrb[0].mxu0
        %1228 = vdwg.mxu0
        %v1229 = vmax.f32 %v1226, -4.0
        %v1230 = vmin.f32 %v1229, 4.0
        %vm1231 = vcmask 64512
        %v1232 = vsel %vm1231, %v1226, 0.0
        %v1233 = vrot.slane %v1232, 4
        %v1234 = vadd.f32 %v1232, %v1233
        %v1235 = vrot.slane %v1234, 2
        %v1236 = vadd.f32 %v1234, %v1235
        %v1237 = vrot.slane %v1236, 1
        %v1238 = vadd.f32 %v1236, %v1237
        %v1239 = vrcp.pop 8.0
        %v1240 = vmul.f32 %v1238, %v1239
        %v1241 = vsub.f32 %v1226, %v1240
        %v1242 = vmul.f32 %v1241, %v1241
        %v1243 = vsel %vm1231, %v1242, 0.0
        %v1244 = vrot.slane %v1243, 4
        %v1245 = vadd.f32 %v1243, %v1244
        %v1246 = vrot.slane %v1245, 2
        %v1247 = vadd.f32 %v1245, %v1246
        %v1248 = vrot.slane %v1247, 1
        %v1249 = vadd.f32 %v1247, %v1248
        %v1250 = vmul.f32 %v1249, %v1239
        %v1251 = vadd.f32 %v1250, 1e-05
        %v1252 = vrsqrt.pop %v1251
        %v1253 = vmul.f32 %v1241, %v1252
        %v1254 = vld [vmem:[%s7 + $0xd] sm:$0x1]
        %v1256 = vlaneseq
        %v1257 = vshrl.u32 %v1256, 7
        %v1258 = vsub.s32 0, %v1257
        %v1259 = vrot.slane %v1254, %v1258
        %v1261 = vmul.f32 %v1253, %v1259
        %v1262 = vld [vmem:[%s7 + $0xe] sm:$0x1]
        %v1264 = vlaneseq
        %v1265 = vshrl.u32 %v1264, 7
        %v1266 = vsub.s32 0, %v1265
        %v1267 = vrot.slane %v1262, %v1266
        %v1269 = vadd.f32 %v1261, %v1267
        %v1270 = vmul.f32 %v1230, 1.442695
        %v1271 = vpow.pop %v1270
        %1273 = vrot.lane.b32.xlu0 %v319, 116
        %v1274 = vpop.permute.xlu0 %1273
        %v1276 = vmul.f32 %v1271, %v1274
        %1278 = vrot.lane.b32.xlu0 %v1276, 120
        %v1279 = vpop.permute.xlu0 %1278
        %v1281 = vadd.f32 %v1269, %v1279
        %v1282 = vld [vmem:[%s5] sm:$0xff]
        %v1283 = vpack.c.bf16 %v1281, %v1281
        %v1285 = vunpack.c.l.b16 %v1282
        %v1286 = vunpack.c.h.b16 %v1282
        %v1287 = vpack.c.b16 %v1285, %v1285
        %v1288 = vpack.c.b16 %v1286, %v1286
        %v1290 = vsel %vm1231, %v1283, 0
        %vm1292 = vcmask 1043456
        %v1294 = vsel %vm1292, %v1287, 0
        %v1297 = vsel %vm1292, %v1288, 0
        %1299 = vmatprep.subr.bf16.mxu0 %v1297
        %1300 = vmatpush1.bf16.msra.mxu0 %v1294
        %1301 = vmatprep.subr.bf16.mxu0 0
        %1302 = vmatpush1.bf16.msra.mxu0 0
        %1303 = vmatprep.subr.bf16.mxu0 0
        %1304 = vmatpush1.bf16.msra.mxu0 0
        %1305 = vmatprep.subr.bf16.mxu0 0
        %1306 = vmatpush1.bf16.msra.mxu0 0
        %1307 = vmatprep.subr.bf16.mxu0 0
        %1308 = vmatpush1.bf16.msra.mxu0 0
        %1309 = vmatprep.subr.bf16.mxu0 0
        %1310 = vmatpush1.bf16.msra.mxu0 0
        %1311 = vmatprep.subr.bf16.mxu0 0
        %1312 = vmatpush1.bf16.msra.mxu0 0
        %1313 = vmatprep.subr.bf16.mxu0 0
        %1314 = vmatpush1.bf16.msra.mxu0 0
        %1315 = vmatprep.subr.bf16.mxu0 0
        %1316 = vmatpush1.bf16.msra.mxu0 0
        %1317 = vmatprep.subr.bf16.mxu0 0
        %1318 = vmatpush1.bf16.msra.mxu0 0
        %1319 = vmatprep.subr.bf16.mxu0 0
        %1320 = vmatpush1.bf16.msra.mxu0 0
        %1321 = vmatprep.subr.bf16.mxu0 0
        %1322 = vmatpush1.bf16.msra.mxu0 0
        %1323 = vmatprep.subr.bf16.mxu0 0
        %1324 = vmatpush1.bf16.msra.mxu0 0
        %1325 = vmatprep.subr.bf16.mxu0 0
        %1326 = vmatpush1.bf16.msra.mxu0 0
        %1327 = vmatprep.subr.bf16.mxu0 0
        %1328 = vmatpush1.bf16.msra.mxu0 0
        %1329 = vmatprep.subr.bf16.mxu0 0
        %1330 = vmatpush1.bf16.msra.mxu0 0
        %1331 = vmatprep.mubr.bf16.mxu0 0
        %1332 = vmatmul.mubr.bf16.gmra.mrb[0].mxu0 %v1290
        %v1333 = vpop.f32.mrb[0].mxu0
        %v1334 = vadd.f32 0.0, %v1333
        %v1335 = vpop.f32.mrb[0].mxu0
        %v1336 = vadd.f32 0.0, %v1335
        %v1337 = vpop.f32.mrb[0].mxu0
        %v1338 = vpop.f32.mrb[0].mxu0
        %1339 = vdwg.mxu0
        %v1340 = vadd.f32 %v464, %v1334
        %v1341 = vadd.f32 %v466, %v1336
        %v1342 = vmax.f32 %v1340, 0.0
        %v1343 = vmax.f32 %v1341, 0.0
        %s1344 = scalar_lea.vmem [#allocation2], 512
        %v1345 = vld [vmem:[%s1344] sm:$0xff]
        %v1346 = vld [vmem:[%s1344 + $0x8] sm:$0xff]
        %v1347 = vld [vmem:[%s1344 + $0x10] sm:$0xff]
        %v1348 = vld [vmem:[%s1344 + $0x18] sm:$0xff]
        %v1349 = vld [vmem:[%s1344 + $0x20] sm:$0xff]
        %v1350 = vld [vmem:[%s1344 + $0x28] sm:$0xff]
        %v1351 = vld [vmem:[%s1344 + $0x30] sm:$0xff]
        %v1352 = vld [vmem:[%s1344 + $0x38] sm:$0xff]
        %v1353 = vld [vmem:[%s1344 + $0x40] sm:$0xff]
        %v1354 = vld [vmem:[%s1344 + $0x48] sm:$0xff]
        %v1355 = vld [vmem:[%s1344 + $0x50] sm:$0xff]
        %v1356 = vld [vmem:[%s1344 + $0x58] sm:$0xff]
        %v1357 = vld [vmem:[%s1344 + $0x60] sm:$0xff]
        %v1358 = vld [vmem:[%s1344 + $0x68] sm:$0xff]
        %v1359 = vld [vmem:[%s1344 + $0x70] sm:$0xff]
        %v1360 = vld [vmem:[%s1344 + $0x78] sm:$0xff]
        %v1361 = vld [vmem:[%s1344 + $0x80] sm:$0xff]
        %v1362 = vld [vmem:[%s1344 + $0x88] sm:$0xff]
        %v1363 = vld [vmem:[%s1344 + $0x90] sm:$0xff]
        %v1364 = vld [vmem:[%s1344 + $0x98] sm:$0xff]
        %v1365 = vld [vmem:[%s1344 + $0xa0] sm:$0xff]
        %v1366 = vld [vmem:[%s1344 + $0xa8] sm:$0xff]
        %v1367 = vld [vmem:[%s1344 + $0xb0] sm:$0xff]
        %v1368 = vld [vmem:[%s1344 + $0xb8] sm:$0xff]
        %v1369 = vld [vmem:[%s1344 + $0xc0] sm:$0xff]
        %v1370 = vld [vmem:[%s1344 + $0xc8] sm:$0xff]
        %v1371 = vld [vmem:[%s1344 + $0xd0] sm:$0xff]
        %v1372 = vld [vmem:[%s1344 + $0xd8] sm:$0xff]
        %v1373 = vld [vmem:[%s1344 + $0xe0] sm:$0xff]
        %v1374 = vld [vmem:[%s1344 + $0xe8] sm:$0xff]
        %v1375 = vld [vmem:[%s1344 + $0xf0] sm:$0xff]
        %v1376 = vld [vmem:[%s1344 + $0xf8] sm:$0xff]
        %v1377 = vpack.c.bf16 %v1342, %v1342
        %v1378 = vpack.c.bf16 %v1343, %v1343
        %v1379 = vld [vmem:[%s7 + $0x8] sm:$0x3]
        %v1381 = vlaneseq
        %v1382 = vshrl.u32 %v1381, 7
        %v1383 = vsub.s32 0, %v1382
        %v1384 = vrot.slane %v1379, %v1383
        %v1385 = vlaneseq
        %v1386 = vshrl.u32 %v1385, 7
        %v1387 = vsub.s32 1, %v1386
        %v1388 = vrot.slane %v1379, %v1387
        %v1423 = vunpack.c.l.b16 %v1345
        %v1424 = vunpack.c.h.b16 %v1345
        %v1425 = vunpack.c.l.b16 %v1346
        %v1426 = vunpack.c.h.b16 %v1346
        %v1427 = vunpack.c.l.b16 %v1347
        %v1428 = vunpack.c.h.b16 %v1347
        %v1429 = vunpack.c.l.b16 %v1348
        %v1430 = vunpack.c.h.b16 %v1348
        %v1431 = vunpack.c.l.b16 %v1349
        %v1432 = vunpack.c.h.b16 %v1349
        %v1433 = vunpack.c.l.b16 %v1350
        %v1434 = vunpack.c.h.b16 %v1350
        %v1435 = vunpack.c.l.b16 %v1351
        %v1436 = vunpack.c.h.b16 %v1351
        %v1437 = vunpack.c.l.b16 %v1352
        %v1438 = vunpack.c.h.b16 %v1352
        %v1439 = vunpack.c.l.b16 %v1353
        %v1440 = vunpack.c.h.b16 %v1353
        %v1441 = vunpack.c.l.b16 %v1354
        %v1442 = vunpack.c.h.b16 %v1354
        %v1443 = vunpack.c.l.b16 %v1355
        %v1444 = vunpack.c.h.b16 %v1355
        %v1445 = vunpack.c.l.b16 %v1356
        %v1446 = vunpack.c.h.b16 %v1356
        %v1447 = vunpack.c.l.b16 %v1357
        %v1448 = vunpack.c.h.b16 %v1357
        %v1449 = vunpack.c.l.b16 %v1358
        %v1450 = vunpack.c.h.b16 %v1358
        %v1451 = vunpack.c.l.b16 %v1359
        %v1452 = vunpack.c.h.b16 %v1359
        %v1453 = vunpack.c.l.b16 %v1360
        %v1454 = vunpack.c.h.b16 %v1360
        %v1455 = vunpack.c.l.b16 %v1361
        %v1456 = vunpack.c.h.b16 %v1361
        %v1457 = vunpack.c.l.b16 %v1362
        %v1458 = vunpack.c.h.b16 %v1362
        %v1459 = vunpack.c.l.b16 %v1363
        %v1460 = vunpack.c.h.b16 %v1363
        %v1461 = vunpack.c.l.b16 %v1364
        %v1462 = vunpack.c.h.b16 %v1364
        %v1463 = vunpack.c.l.b16 %v1365
        %v1464 = vunpack.c.h.b16 %v1365
        %v1465 = vunpack.c.l.b16 %v1366
        %v1466 = vunpack.c.h.b16 %v1366
        %v1467 = vunpack.c.l.b16 %v1367
        %v1468 = vunpack.c.h.b16 %v1367
        %v1469 = vunpack.c.l.b16 %v1368
        %v1470 = vunpack.c.h.b16 %v1368
        %v1471 = vunpack.c.l.b16 %v1369
        %v1472 = vunpack.c.h.b16 %v1369
        %v1473 = vunpack.c.l.b16 %v1370
        %v1474 = vunpack.c.h.b16 %v1370
        %v1475 = vunpack.c.l.b16 %v1371
        %v1476 = vunpack.c.h.b16 %v1371
        %v1477 = vunpack.c.l.b16 %v1372
        %v1478 = vunpack.c.h.b16 %v1372
        %v1479 = vunpack.c.l.b16 %v1373
        %v1480 = vunpack.c.h.b16 %v1373
        %v1481 = vunpack.c.l.b16 %v1374
        %v1482 = vunpack.c.h.b16 %v1374
        %v1483 = vunpack.c.l.b16 %v1375
        %v1484 = vunpack.c.h.b16 %v1375
        %v1485 = vunpack.c.l.b16 %v1376
        %v1486 = vunpack.c.h.b16 %v1376
        %v1487 = vpack.c.b16 %v1425, %v1423
        %v1488 = vpack.c.b16 %v1426, %v1424
        %v1489 = vpack.c.b16 %v1429, %v1427
        %v1490 = vpack.c.b16 %v1430, %v1428
        %v1491 = vpack.c.b16 %v1433, %v1431
        %v1492 = vpack.c.b16 %v1434, %v1432
        %v1493 = vpack.c.b16 %v1437, %v1435
        %v1494 = vpack.c.b16 %v1438, %v1436
        %v1495 = vpack.c.b16 %v1441, %v1439
        %v1496 = vpack.c.b16 %v1442, %v1440
        %v1497 = vpack.c.b16 %v1445, %v1443
        %v1498 = vpack.c.b16 %v1446, %v1444
        %v1499 = vpack.c.b16 %v1449, %v1447
        %v1500 = vpack.c.b16 %v1450, %v1448
        %v1501 = vpack.c.b16 %v1453, %v1451
        %v1502 = vpack.c.b16 %v1454, %v1452
        %v1503 = vpack.c.b16 %v1457, %v1455
        %v1504 = vpack.c.b16 %v1458, %v1456
        %v1505 = vpack.c.b16 %v1461, %v1459
        %v1506 = vpack.c.b16 %v1462, %v1460
        %v1507 = vpack.c.b16 %v1465, %v1463
        %v1508 = vpack.c.b16 %v1466, %v1464
        %v1509 = vpack.c.b16 %v1469, %v1467
        %v1510 = vpack.c.b16 %v1470, %v1468
        %v1511 = vpack.c.b16 %v1473, %v1471
        %v1512 = vpack.c.b16 %v1474, %v1472
        %v1513 = vpack.c.b16 %v1477, %v1475
        %v1514 = vpack.c.b16 %v1478, %v1476
        %v1515 = vpack.c.b16 %v1481, %v1479
        %v1516 = vpack.c.b16 %v1482, %v1480
        %v1517 = vpack.c.b16 %v1485, %v1483
        %v1518 = vpack.c.b16 %v1486, %v1484
        %1551 = vmatprep.subr.bf16.mxu0 %v1488
        %1552 = vmatpush1.bf16.msra.mxu0 %v1487
        %1553 = vmatprep.subr.bf16.mxu0 %v1490
        %1554 = vmatpush1.bf16.msra.mxu0 %v1489
        %1555 = vmatprep.subr.bf16.mxu0 %v1492
        %1556 = vmatpush1.bf16.msra.mxu0 %v1491
        %1557 = vmatprep.subr.bf16.mxu0 %v1494
        %1558 = vmatpush1.bf16.msra.mxu0 %v1493
        %1559 = vmatprep.subr.bf16.mxu0 %v1496
        %1560 = vmatpush1.bf16.msra.mxu0 %v1495
        %1561 = vmatprep.subr.bf16.mxu0 %v1498
        %1562 = vmatpush1.bf16.msra.mxu0 %v1497
        %1563 = vmatprep.subr.bf16.mxu0 %v1500
        %1564 = vmatpush1.bf16.msra.mxu0 %v1499
        %1565 = vmatprep.subr.bf16.mxu0 %v1502
        %1566 = vmatpush1.bf16.msra.mxu0 %v1501
        %1567 = vmatprep.subr.bf16.mxu0 %v1504
        %1568 = vmatpush1.bf16.msra.mxu0 %v1503
        %1569 = vmatprep.subr.bf16.mxu0 %v1506
        %1570 = vmatpush1.bf16.msra.mxu0 %v1505
        %1571 = vmatprep.subr.bf16.mxu0 %v1508
        %1572 = vmatpush1.bf16.msra.mxu0 %v1507
        %1573 = vmatprep.subr.bf16.mxu0 %v1510
        %1574 = vmatpush1.bf16.msra.mxu0 %v1509
        %1575 = vmatprep.subr.bf16.mxu0 %v1512
        %1576 = vmatpush1.bf16.msra.mxu0 %v1511
        %1577 = vmatprep.subr.bf16.mxu0 %v1514
        %1578 = vmatpush1.bf16.msra.mxu0 %v1513
        %1579 = vmatprep.subr.bf16.mxu0 %v1516
        %1580 = vmatpush1.bf16.msra.mxu0 %v1515
        %1581 = vmatprep.subr.bf16.mxu0 %v1518
        %1582 = vmatpush1.bf16.msra.mxu0 %v1517
        %1583 = vmatprep.mubr.bf16.mxu0 %v1378
        %1584 = vmatmul.mubr.bf16.gmra.mrb[0].mxu0 %v1377
        %v1585 = vpop.f32.mrb[0].mxu0
        %v1586 = vadd.f32 %v1384, %v1585
        %v1587 = vpop.f32.mrb[0].mxu0
        %v1588 = vadd.f32 %v1388, %v1587
        %v1589 = vpop.f32.mrb[0].mxu0
        %v1590 = vpop.f32.mrb[0].mxu0
        %1591 = vdwg.mxu0
        %v1592 = vmax.f32 %v1586, 0.0
        %v1593 = vmax.f32 %v1588, 0.0
        %s1594 = scalar_lea.vmem [#allocation2], 768
        %v1595 = vld [vmem:[%s1594] sm:$0xff]
        %v1596 = vld [vmem:[%s1594 + $0x8] sm:$0xff]
        %v1597 = vld [vmem:[%s1594 + $0x10] sm:$0xff]
        %v1598 = vld [vmem:[%s1594 + $0x18] sm:$0xff]
        %v1599 = vld [vmem:[%s1594 + $0x20] sm:$0xff]
        %v1600 = vld [vmem:[%s1594 + $0x28] sm:$0xff]
        %v1601 = vld [vmem:[%s1594 + $0x30] sm:$0xff]
        %v1602 = vld [vmem:[%s1594 + $0x38] sm:$0xff]
        %v1603 = vld [vmem:[%s1594 + $0x40] sm:$0xff]
        %v1604 = vld [vmem:[%s1594 + $0x48] sm:$0xff]
        %v1605 = vld [vmem:[%s1594 + $0x50] sm:$0xff]
        %v1606 = vld [vmem:[%s1594 + $0x58] sm:$0xff]
        %v1607 = vld [vmem:[%s1594 + $0x60] sm:$0xff]
        %v1608 = vld [vmem:[%s1594 + $0x68] sm:$0xff]
        %v1609 = vld [vmem:[%s1594 + $0x70] sm:$0xff]
        %v1610 = vld [vmem:[%s1594 + $0x78] sm:$0xff]
        %v1611 = vld [vmem:[%s1594 + $0x80] sm:$0xff]
        %v1612 = vld [vmem:[%s1594 + $0x88] sm:$0xff]
        %v1613 = vld [vmem:[%s1594 + $0x90] sm:$0xff]
        %v1614 = vld [vmem:[%s1594 + $0x98] sm:$0xff]
        %v1615 = vld [vmem:[%s1594 + $0xa0] sm:$0xff]
        %v1616 = vld [vmem:[%s1594 + $0xa8] sm:$0xff]
        %v1617 = vld [vmem:[%s1594 + $0xb0] sm:$0xff]
        %v1618 = vld [vmem:[%s1594 + $0xb8] sm:$0xff]
        %v1619 = vld [vmem:[%s1594 + $0xc0] sm:$0xff]
        %v1620 = vld [vmem:[%s1594 + $0xc8] sm:$0xff]
        %v1621 = vld [vmem:[%s1594 + $0xd0] sm:$0xff]
        %v1622 = vld [vmem:[%s1594 + $0xd8] sm:$0xff]
        %v1623 = vld [vmem:[%s1594 + $0xe0] sm:$0xff]
        %v1624 = vld [vmem:[%s1594 + $0xe8] sm:$0xff]
        %v1625 = vld [vmem:[%s1594 + $0xf0] sm:$0xff]
        %v1626 = vld [vmem:[%s1594 + $0xf8] sm:$0xff]
        %v1627 = vpack.c.bf16 %v1592, %v1592
        %v1628 = vpack.c.bf16 %v1593, %v1593
        %v1629 = vld [vmem:[%s7 + $0xa] sm:$0x3]
        %v1631 = vlaneseq
        %v1632 = vshrl.u32 %v1631, 7
        %v1633 = vsub.s32 0, %v1632
        %v1634 = vrot.slane %v1629, %v1633
        %v1635 = vlaneseq
        %v1636 = vshrl.u32 %v1635, 7
        %v1637 = vsub.s32 1, %v1636
        %v1638 = vrot.slane %v1629, %v1637
        %v1673 = vunpack.c.l.b16 %v1595
        %v1674 = vunpack.c.h.b16 %v1595
        %v1675 = vunpack.c.l.b16 %v1596
        %v1676 = vunpack.c.h.b16 %v1596
        %v1677 = vunpack.c.l.b16 %v1597
        %v1678 = vunpack.c.h.b16 %v1597
        %v1679 = vunpack.c.l.b16 %v1598
        %v1680 = vunpack.c.h.b16 %v1598
        %v1681 = vunpack.c.l.b16 %v1599
        %v1682 = vunpack.c.h.b16 %v1599
        %v1683 = vunpack.c.l.b16 %v1600
        %v1684 = vunpack.c.h.b16 %v1600
        %v1685 = vunpack.c.l.b16 %v1601
        %v1686 = vunpack.c.h.b16 %v1601
        %v1687 = vunpack.c.l.b16 %v1602
        %v1688 = vunpack.c.h.b16 %v1602
        %v1689 = vunpack.c.l.b16 %v1603
        %v1690 = vunpack.c.h.b16 %v1603
        %v1691 = vunpack.c.l.b16 %v1604
        %v1692 = vunpack.c.h.b16 %v1604
        %v1693 = vunpack.c.l.b16 %v1605
        %v1694 = vunpack.c.h.b16 %v1605
        %v1695 = vunpack.c.l.b16 %v1606
        %v1696 = vunpack.c.h.b16 %v1606
        %v1697 = vunpack.c.l.b16 %v1607
        %v1698 = vunpack.c.h.b16 %v1607
        %v1699 = vunpack.c.l.b16 %v1608
        %v1700 = vunpack.c.h.b16 %v1608
        %v1701 = vunpack.c.l.b16 %v1609
        %v1702 = vunpack.c.h.b16 %v1609
        %v1703 = vunpack.c.l.b16 %v1610
        %v1704 = vunpack.c.h.b16 %v1610
        %v1705 = vunpack.c.l.b16 %v1611
        %v1706 = vunpack.c.h.b16 %v1611
        %v1707 = vunpack.c.l.b16 %v1612
        %v1708 = vunpack.c.h.b16 %v1612
        %v1709 = vunpack.c.l.b16 %v1613
        %v1710 = vunpack.c.h.b16 %v1613
        %v1711 = vunpack.c.l.b16 %v1614
        %v1712 = vunpack.c.h.b16 %v1614
        %v1713 = vunpack.c.l.b16 %v1615
        %v1714 = vunpack.c.h.b16 %v1615
        %v1715 = vunpack.c.l.b16 %v1616
        %v1716 = vunpack.c.h.b16 %v1616
        %v1717 = vunpack.c.l.b16 %v1617
        %v1718 = vunpack.c.h.b16 %v1617
        %v1719 = vunpack.c.l.b16 %v1618
        %v1720 = vunpack.c.h.b16 %v1618
        %v1721 = vunpack.c.l.b16 %v1619
        %v1722 = vunpack.c.h.b16 %v1619
        %v1723 = vunpack.c.l.b16 %v1620
        %v1724 = vunpack.c.h.b16 %v1620
        %v1725 = vunpack.c.l.b16 %v1621
        %v1726 = vunpack.c.h.b16 %v1621
        %v1727 = vunpack.c.l.b16 %v1622
        %v1728 = vunpack.c.h.b16 %v1622
        %v1729 = vunpack.c.l.b16 %v1623
        %v1730 = vunpack.c.h.b16 %v1623
        %v1731 = vunpack.c.l.b16 %v1624
        %v1732 = vunpack.c.h.b16 %v1624
        %v1733 = vunpack.c.l.b16 %v1625
        %v1734 = vunpack.c.h.b16 %v1625
        %v1735 = vunpack.c.l.b16 %v1626
        %v1736 = vunpack.c.h.b16 %v1626
        %v1737 = vpack.c.b16 %v1675, %v1673
        %v1738 = vpack.c.b16 %v1676, %v1674
        %v1739 = vpack.c.b16 %v1679, %v1677
        %v1740 = vpack.c.b16 %v1680, %v1678
        %v1741 = vpack.c.b16 %v1683, %v1681
        %v1742 = vpack.c.b16 %v1684, %v1682
        %v1743 = vpack.c.b16 %v1687, %v1685
        %v1744 = vpack.c.b16 %v1688, %v1686
        %v1745 = vpack.c.b16 %v1691, %v1689
        %v1746 = vpack.c.b16 %v1692, %v1690
        %v1747 = vpack.c.b16 %v1695, %v1693
        %v1748 = vpack.c.b16 %v1696, %v1694
        %v1749 = vpack.c.b16 %v1699, %v1697
        %v1750 = vpack.c.b16 %v1700, %v1698
        %v1751 = vpack.c.b16 %v1703, %v1701
        %v1752 = vpack.c.b16 %v1704, %v1702
        %v1753 = vpack.c.b16 %v1707, %v1705
        %v1754 = vpack.c.b16 %v1708, %v1706
        %v1755 = vpack.c.b16 %v1711, %v1709
        %v1756 = vpack.c.b16 %v1712, %v1710
        %v1757 = vpack.c.b16 %v1715, %v1713
        %v1758 = vpack.c.b16 %v1716, %v1714
        %v1759 = vpack.c.b16 %v1719, %v1717
        %v1760 = vpack.c.b16 %v1720, %v1718
        %v1761 = vpack.c.b16 %v1723, %v1721
        %v1762 = vpack.c.b16 %v1724, %v1722
        %v1763 = vpack.c.b16 %v1727, %v1725
        %v1764 = vpack.c.b16 %v1728, %v1726
        %v1765 = vpack.c.b16 %v1731, %v1729
        %v1766 = vpack.c.b16 %v1732, %v1730
        %v1767 = vpack.c.b16 %v1735, %v1733
        %v1768 = vpack.c.b16 %v1736, %v1734
        %1801 = vmatprep.subr.bf16.mxu0 %v1738
        %1802 = vmatpush1.bf16.msra.mxu0 %v1737
        %1803 = vmatprep.subr.bf16.mxu0 %v1740
        %1804 = vmatpush1.bf16.msra.mxu0 %v1739
        %1805 = vmatprep.subr.bf16.mxu0 %v1742
        %1806 = vmatpush1.bf16.msra.mxu0 %v1741
        %1807 = vmatprep.subr.bf16.mxu0 %v1744
        %1808 = vmatpush1.bf16.msra.mxu0 %v1743
        %1809 = vmatprep.subr.bf16.mxu0 %v1746
        %1810 = vmatpush1.bf16.msra.mxu0 %v1745
        %1811 = vmatprep.subr.bf16.mxu0 %v1748
        %1812 = vmatpush1.bf16.msra.mxu0 %v1747
        %1813 = vmatprep.subr.bf16.mxu0 %v1750
        %1814 = vmatpush1.bf16.msra.mxu0 %v1749
        %1815 = vmatprep.subr.bf16.mxu0 %v1752
        %1816 = vmatpush1.bf16.msra.mxu0 %v1751
        %1817 = vmatprep.subr.bf16.mxu0 %v1754
        %1818 = vmatpush1.bf16.msra.mxu0 %v1753
        %1819 = vmatprep.subr.bf16.mxu0 %v1756
        %1820 = vmatpush1.bf16.msra.mxu0 %v1755
        %1821 = vmatprep.subr.bf16.mxu0 %v1758
        %1822 = vmatpush1.bf16.msra.mxu0 %v1757
        %1823 = vmatprep.subr.bf16.mxu0 %v1760
        %1824 = vmatpush1.bf16.msra.mxu0 %v1759
        %1825 = vmatprep.subr.bf16.mxu0 %v1762
        %1826 = vmatpush1.bf16.msra.mxu0 %v1761
        %1827 = vmatprep.subr.bf16.mxu0 %v1764
        %1828 = vmatpush1.bf16.msra.mxu0 %v1763
        %1829 = vmatprep.subr.bf16.mxu0 %v1766
        %1830 = vmatpush1.bf16.msra.mxu0 %v1765
        %1831 = vmatprep.subr.bf16.mxu0 %v1768
        %1832 = vmatpush1.bf16.msra.mxu0 %v1767
        %1833 = vmatprep.mubr.bf16.mxu0 %v1628
        %1834 = vmatmul.mubr.bf16.gmra.mrb[0].mxu0 %v1627
        %v1835 = vpop.f32.mrb[0].mxu0
        %v1836 = vadd.f32 %v1634, %v1835
        %v1837 = vpop.f32.mrb[0].mxu0
        %v1838 = vadd.f32 %v1638, %v1837
        %v1839 = vpop.f32.mrb[0].mxu0
        %v1840 = vpop.f32.mrb[0].mxu0
        %1841 = vdwg.mxu0
        %v1842 = vmax.f32 %v1836, 0.0
        %v1843 = vmax.f32 %v1838, 0.0
        %v1844 = vld [vmem:[%s6] sm:$0xf]
        %v1845 = vld [vmem:[%s6 + $0x4] sm:$0xf]
        %v1846 = vld [vmem:[%s6 + $0x8] sm:$0xf]
        %v1847 = vld [vmem:[%s6 + $0xc] sm:$0xf]
        %v1848 = vld [vmem:[%s6 + $0x10] sm:$0xf]
        %v1849 = vld [vmem:[%s6 + $0x14] sm:$0xf]
        %v1850 = vld [vmem:[%s6 + $0x18] sm:$0xf]
        %v1851 = vld [vmem:[%s6 + $0x1c] sm:$0xf]
        %v1852 = vld [vmem:[%s6 + $0x20] sm:$0xf]
        %v1853 = vld [vmem:[%s6 + $0x24] sm:$0xf]
        %v1854 = vld [vmem:[%s6 + $0x28] sm:$0xf]
        %v1855 = vld [vmem:[%s6 + $0x2c] sm:$0xf]
        %v1856 = vld [vmem:[%s6 + $0x30] sm:$0xf]
        %v1857 = vld [vmem:[%s6 + $0x34] sm:$0xf]
        %v1858 = vld [vmem:[%s6 + $0x38] sm:$0xf]
        %v1859 = vld [vmem:[%s6 + $0x3c] sm:$0xf]
        %v1860 = vld [vmem:[%s6 + $0x40] sm:$0xf]
        %v1861 = vld [vmem:[%s6 + $0x44] sm:$0xf]
        %v1862 = vld [vmem:[%s6 + $0x48] sm:$0xf]
        %v1863 = vld [vmem:[%s6 + $0x4c] sm:$0xf]
        %v1864 = vld [vmem:[%s6 + $0x50] sm:$0xf]
        %v1865 = vld [vmem:[%s6 + $0x54] sm:$0xf]
        %v1866 = vld [vmem:[%s6 + $0x58] sm:$0xf]
        %v1867 = vld [vmem:[%s6 + $0x5c] sm:$0xf]
        %v1868 = vld [vmem:[%s6 + $0x60] sm:$0xf]
        %v1869 = vld [vmem:[%s6 + $0x64] sm:$0xf]
        %v1870 = vld [vmem:[%s6 + $0x68] sm:$0xf]
        %v1871 = vld [vmem:[%s6 + $0x6c] sm:$0xf]
        %v1872 = vld [vmem:[%s6 + $0x70] sm:$0xf]
        %v1873 = vld [vmem:[%s6 + $0x74] sm:$0xf]
        %v1874 = vld [vmem:[%s6 + $0x78] sm:$0xf]
        %v1875 = vld [vmem:[%s6 + $0x7c] sm:$0xf]
        %v1876 = vpack.c.bf16 %v1842, %v1842
        %v1877 = vpack.c.bf16 %v1843, %v1843
        %v1878 = vld [vmem:[%s7 + $0xf] sm:$0x1]
        %v1880 = vlaneseq
        %v1881 = vshrl.u32 %v1880, 7
        %v1882 = vsub.s32 0, %v1881
        %v1883 = vrot.slane %v1878, %v1882
        %v1917 = vunpack.c.l.b16 %v1844
        %v1918 = vunpack.c.l.b16 %v1845
        %v1919 = vunpack.c.l.b16 %v1846
        %v1920 = vunpack.c.l.b16 %v1847
        %v1921 = vunpack.c.l.b16 %v1848
        %v1922 = vunpack.c.l.b16 %v1849
        %v1923 = vunpack.c.l.b16 %v1850
        %v1924 = vunpack.c.l.b16 %v1851
        %v1925 = vunpack.c.l.b16 %v1852
        %v1926 = vunpack.c.l.b16 %v1853
        %v1927 = vunpack.c.l.b16 %v1854
        %v1928 = vunpack.c.l.b16 %v1855
        %v1929 = vunpack.c.l.b16 %v1856
        %v1930 = vunpack.c.l.b16 %v1857
        %v1931 = vunpack.c.l.b16 %v1858
        %v1932 = vunpack.c.l.b16 %v1859
        %v1933 = vunpack.c.l.b16 %v1860
        %v1934 = vunpack.c.l.b16 %v1861
        %v1935 = vunpack.c.l.b16 %v1862
        %v1936 = vunpack.c.l.b16 %v1863
        %v1937 = vunpack.c.l.b16 %v1864
        %v1938 = vunpack.c.l.b16 %v1865
        %v1939 = vunpack.c.l.b16 %v1866
        %v1940 = vunpack.c.l.b16 %v1867
        %v1941 = vunpack.c.l.b16 %v1868
        %v1942 = vunpack.c.l.b16 %v1869
        %v1943 = vunpack.c.l.b16 %v1870
        %v1944 = vunpack.c.l.b16 %v1871
        %v1945 = vunpack.c.l.b16 %v1872
        %v1946 = vunpack.c.l.b16 %v1873
        %v1947 = vunpack.c.l.b16 %v1874
        %v1948 = vunpack.c.l.b16 %v1875
        %v1949 = vpack.c.b16 %v1918, %v1917
        %v1950 = vpack.c.b16 %v1920, %v1919
        %v1951 = vpack.c.b16 %v1922, %v1921
        %v1952 = vpack.c.b16 %v1924, %v1923
        %v1953 = vpack.c.b16 %v1926, %v1925
        %v1954 = vpack.c.b16 %v1928, %v1927
        %v1955 = vpack.c.b16 %v1930, %v1929
        %v1956 = vpack.c.b16 %v1932, %v1931
        %v1957 = vpack.c.b16 %v1934, %v1933
        %v1958 = vpack.c.b16 %v1936, %v1935
        %v1959 = vpack.c.b16 %v1938, %v1937
        %v1960 = vpack.c.b16 %v1940, %v1939
        %v1961 = vpack.c.b16 %v1942, %v1941
        %v1962 = vpack.c.b16 %v1944, %v1943
        %v1963 = vpack.c.b16 %v1946, %v1945
        %v1964 = vpack.c.b16 %v1948, %v1947
        %1981 = vmatprep.subr.bf16.mxu0 0
        %1982 = vmatpush1.bf16.msra.mxu0 %v1949
        %1983 = vmatprep.subr.bf16.mxu0 0
        %1984 = vmatpush1.bf16.msra.mxu0 %v1950
        %1985 = vmatprep.subr.bf16.mxu0 0
        %1986 = vmatpush1.bf16.msra.mxu0 %v1951
        %1987 = vmatprep.subr.bf16.mxu0 0
        %1988 = vmatpush1.bf16.msra.mxu0 %v1952
        %1989 = vmatprep.subr.bf16.mxu0 0
        %1990 = vmatpush1.bf16.msra.mxu0 %v1953
        %1991 = vmatprep.subr.bf16.mxu0 0
        %1992 = vmatpush1.bf16.msra.mxu0 %v1954
        %1993 = vmatprep.subr.bf16.mxu0 0
        %1994 = vmatpush1.bf16.msra.mxu0 %v1955
        %1995 = vmatprep.subr.bf16.mxu0 0
        %1996 = vmatpush1.bf16.msra.mxu0 %v1956
        %1997 = vmatprep.subr.bf16.mxu0 0
        %1998 = vmatpush1.bf16.msra.mxu0 %v1957
        %1999 = vmatprep.subr.bf16.mxu0 0
        %2000 = vmatpush1.bf16.msra.mxu0 %v1958
        %2001 = vmatprep.subr.bf16.mxu0 0
        %2002 = vmatpush1.bf16.msra.mxu0 %v1959
        %2003 = vmatprep.subr.bf16.mxu0 0
        %2004 = vmatpush1.bf16.msra.mxu0 %v1960
        %2005 = vmatprep.subr.bf16.mxu0 0
        %2006 = vmatpush1.bf16.msra.mxu0 %v1961
        %2007 = vmatprep.subr.bf16.mxu0 0
        %2008 = vmatpush1.bf16.msra.mxu0 %v1962
        %2009 = vmatprep.subr.bf16.mxu0 0
        %2010 = vmatpush1.bf16.msra.mxu0 %v1963
        %2011 = vmatprep.subr.bf16.mxu0 0
        %2012 = vmatpush1.bf16.msra.mxu0 %v1964
        %2013 = vmatprep.mubr.bf16.mxu0 %v1877
        %2014 = vmatmul.mubr.bf16.gmra.mrb[0].mxu0 %v1876
        %v2015 = vpop.f32.mrb[0].mxu0
        %v2016 = vadd.f32 %v1883, %v2015
        %v2017 = vpop.f32.mrb[0].mxu0
        %v2018 = vpop.f32.mrb[0].mxu0
        %v2019 = vpop.f32.mrb[0].mxu0
        %2020 = vdwg.mxu0
        %v2021 = vtanh.pop %v2016
        %vm2022 = vcmask 31744
        %2023 = vst.msk [vmem:[%s317] sm:$0xff] %vm2022, %v2021
        %2024 = vst.msk [vmem:[%s317 + $0x8] sm:$0xff] %vm1231, %v1269
        %2026 = vrot.lane.b32.xlu0 %v1271, 120
        %v2027 = vpop.permute.xlu0 %2026
        %2029 = vst.msk [vmem:[%s317 + $0x10] sm:$0xff] %vm1231, %v2027
        %p2030 = scmp.lt.s32.totalorder %s20, 3
        %s2031 = scalar_select %p2030, %s20, 3
        %s2032 = smul.addr %s2031, 3
        %s2033 = smul.addr %s2032, 8
        %s2034 = scalar_lea.vmem %s8, %s2033
        // Predicated region
        $region57: #{bnvae_forward.1} parent=51 // pred_check
          %p2035 = pneg %p211
        $region58: #{bnvae_forward.1} parent=51 // pred_check_branch
          %2037 = sbr.rel (%p2035) target = $region60
        $region59: #{bnvae_forward.1} parent=51 // pred_region
          _
        $region60: #{bnvae_forward.1} parent=51 // pred_fallthru
          _
      $region52: #{bnvae_forward.1} parent=5 // pred_fallthru
        _
      %p2038 = scmp.le.s32.totalorder 2, %s15
      // Predicated region
      $region61: #{bnvae_forward.1} parent=5 // pred_check
        %p2039 = pneg %p2038
      $region62: #{bnvae_forward.1} parent=5 // pred_check_branch
        %2041 = sbr.rel (%p2039) target = $region64
      $region63: #{bnvae_forward.1} parent=5 // pred_region
        %s2042 = ssub.s32 %s15, 2
        // Predicated region
        $region65: #{bnvae_forward.1} parent=63 // pred_check
          %p2043 = pneg %p217
        $region66: #{bnvae_forward.1} parent=63 // pred_check_branch
          %2045 = sbr.rel (%p2043) target = $region68
        $region67: #{bnvae_forward.1} parent=63 // pred_region
          %p2046 = scmp.lt.s32.totalorder %s21, 3
          %s2047 = scalar_select %p2046, %s21, 3
          %s2048 = smul.addr %s2047, 3
          %s2049 = smul.addr %s2048, 8
          %s2050 = scalar_lea.vmem %s8, %s2049
        $region68: #{bnvae_forward.1} parent=63 // pred_fallthru
          _
      $region64: #{bnvae_forward.1} parent=5 // pred_fallthru
        _
    $region6: #{bnvae_forward.1} parent=1 // loop_footer
      %s19 = sadd.s32 1, %s15
    $region7: #{bnvae_forward.1} parent=1 // loop_footer_branch
      %14 = sbr.rel target = $region3
    $region8: #{bnvae_forward.1} parent=1 // loop_exit
      _
    %2051 = vsyncpa [#allocation3], 1
    %s2052 = scalar_lea.sflag [#allocation3], 1
    %2053 = vsyncpa %s2052, 1

</llo_original>
